<compile_context>
chip_gen: v6e
topology: v6e:2x2x1
jax: 0.10.0
libtpu: 0.0.40
codegen_flags: <defaults>
</compile_context>

<pallas_src>
import functools

import jax
import jax.numpy as jnp
from jax.experimental import pallas as pl
from jax.experimental.pallas import tpu as pltpu

MATMUL_DTYPE = jnp.bfloat16  # MXU operand dtype; accumulation stays f32.
ACT_DTYPE = jnp.bfloat16     # inter-block activation dtype.


# ---------------------------------------------------------------------------
# Fused per-block kernel.
#   l0/l1/l2 : (B*Ho, (W+2)*Cin)  bf16 row-band LHS planes (rows = (oh, b))
#   a        : (3, (W+2)*Cin, N)  bf16 width-Toeplitz conv weights, N = Wo*Cout
#   bias     : (1, N)  f32        conv bias tiled over ow
#   red      : (N, Cout) f32      lane -> channel averaging matrix
#   bcast    : (Cout, N) f32      channel -> lane broadcast matrix
#   w_cat    : (Ho*N, 2L) bf16    [fc_mean | fc_var], rows in (oh, ow, cout)
#   b_cat    : (1, 2L) f32
#   alpha    : (1, 1) SMEM        PReLU slope (num_parameters=1)
# Outputs:
#   act      : (B*Ho, N) bf16     PReLU(BN(conv)) ; rows=(oh,b), lanes=(ow,cout)
#   z        : (B, 2L) f32        cols [0,L)=mu, [L,2L)=softplus(var)+1e-8
# ---------------------------------------------------------------------------
def _encoder_block_kernel(l0_ref, l1_ref, l2_ref, a_ref, bias_ref, red_ref,
                          bcast_ref, wcat_ref, bcat_ref, alpha_ref,
                          act_ref, z_ref, *, n_b, ho, n_lane, latent):
    # --- convolution: 3 full-height matmuls (one per kernel row) ------------
    y = jnp.dot(l0_ref[...], a_ref[0], preferred_element_type=jnp.float32)
    y = y + jnp.dot(l1_ref[...], a_ref[1], preferred_element_type=jnp.float32)
    y = y + jnp.dot(l2_ref[...], a_ref[2], preferred_element_type=jnp.float32)
    y = y + bias_ref[...]                       # (B*Ho, N) f32, pre-BN

    # --- BatchNorm2d(affine=False), training-mode batch statistics ----------
    mean_lane = jnp.mean(y, axis=0, keepdims=True)                       # (1, N)
    mean_ch = jnp.dot(mean_lane, red_ref[...],
                      preferred_element_type=jnp.float32)                # (1, Cout)
    mean_full = jnp.dot(mean_ch, bcast_ref[...],
                        preferred_element_type=jnp.float32)              # (1, N)
    d = y - mean_full
    var_lane = jnp.mean(d * d, axis=0, keepdims=True)
    var_ch = jnp.dot(var_lane, red_ref[...],
                     preferred_element_type=jnp.float32)
    var_full = jnp.dot(var_ch, bcast_ref[...],
                       preferred_element_type=jnp.float32)
    y_hat = d * jax.lax.rsqrt(var_full + 1e-5)

    # --- PReLU (scalar slope from SMEM), store bf16 activation ---------------
    alpha = alpha_ref[0, 0]
    y_act = jnp.where(y_hat > 0, y_hat, alpha * y_hat)
    act_ref[...] = y_act.astype(act_ref.dtype)

    # --- fused fc_mean || fc_var: z[b] = sum_oh act[oh*B+b,:] @ Wcat_oh ------
    # TODO(synk): replace the static unroll with a grid axis / fori_loop once
    #             Ho grows beyond a handful of rows.
    z = jnp.zeros((n_b, 2 * latent), jnp.float32)
    for oh in range(ho):
        lhs = act_ref[oh * n_b:(oh + 1) * n_b, :]             # (B, N) bf16
        rhs = wcat_ref[oh * n_lane:(oh + 1) * n_lane, :]      # (N, 2L) bf16
        z = z + jnp.dot(lhs, rhs, preferred_element_type=jnp.float32)
    z = z + bcat_ref[...]

    # stable softplus on the variance half: max(z,0) + log1p(exp(-|z|))
    sp = jnp.maximum(z, 0.0) + jnp.log1p(jnp.exp(-jnp.abs(z))) + 1e-8
    cols = jax.lax.broadcasted_iota(jnp.int32, z.shape, 1)
    z_ref[...] = jnp.where(cols < latent, z, sp)


def fused_encoder_block(l0, l1, l2, p, *, nb, ho, n_lane, latent):
    rows = nb * ho
    kw = l0.shape[1]
    two_l = p["b_cat"].shape[1]
    feat = ho * n_lane

    vmem = pl.BlockSpec(memory_space=pltpu.MemorySpace.VMEM)
    smem = pl.BlockSpec(memory_space=pltpu.MemorySpace.SMEM)
    kernel = functools.partial(_encoder_block_kernel,
                               n_b=nb, ho=ho, n_lane=n_lane, latent=latent)

    flops = (2 * 3 * rows * kw * n_lane          # conv matmuls
             + 2 * nb * feat * two_l             # fc matmuls
             + 4 * (n_lane * p["red"].shape[1])  # BN reduce/bcast matmuls
             + 12 * rows * n_lane)               # BN / PReLU elementwise
    bytes_accessed = (3 * l0.size * 2 + p["a_mat"].size * 2
                      + p["w_cat"].size * 2 + p["red"].size * 4
                      + p["bcast"].size * 4 + p["bias_t"].size * 4
                      + p["b_cat"].size * 4
                      + rows * n_lane * 2 + nb * two_l * 4)
    cost = pl.CostEstimate(flops=int(flops),
                           transcendentals=int(2 * nb * two_l + n_lane),
                           bytes_accessed=int(bytes_accessed))

    return pl.pallas_call(
        kernel,
        out_shape=(jax.ShapeDtypeStruct((rows, n_lane), ACT_DTYPE),
                   jax.ShapeDtypeStruct((nb, two_l), jnp.float32)),
        in_specs=[vmem] * 9 + [smem],
        out_specs=(vmem, vmem),
        compiler_params=pltpu.CompilerParams(vmem_limit_bytes=32 * 1024 * 1024),
        cost_estimate=cost,
    )(l0, l1, l2, p["a_mat"], p["bias_t"], p["red"], p["bcast"],
      p["w_cat"], p["b_cat"], p["alpha"])


# ---------------------------------------------------------------------------
# Plain-JAX glue (O(input) bytes): zero-pad and build the three row-band LHS
# planes, rows ordered (oh, b) and flattened to 2D so every in-kernel conv
# operand is a full (already aligned) 2-D array.
# ---------------------------------------------------------------------------
def _make_conv_lhs(h_nhwc):
    bsz, hh, ww, c = h_nhwc.shape
    ho = hh // 2
    xp = jnp.pad(h_nhwc, ((0, 0), (1, 1), (1, 1), (0, 0)))

    def band(start):
        # padded rows start, start+2, ..., start+2*(Ho-1)  -> (B, Ho, W+2, C)
        p = xp[:, start:start + 2 * ho:2]
        p = jnp.transpose(p, (1, 0, 2, 3))                    # (Ho, B, W+2, C)
        return p.reshape(ho * bsz, (ww + 2) * c).astype(MATMUL_DTYPE)

    return band(0), band(1), band(2)


# ---------------------------------------------------------------------------
# Encoder forward (Python loop over blocks, like nn.ModuleList iteration).
# ---------------------------------------------------------------------------
def encoder_block_forward(h_nhwc, p):
    bsz, hh, ww, _ = h_nhwc.shape
    ho, wo = hh // 2, ww // 2
    n_lane = p["bias_t"].shape[1]
    cout = n_lane // wo
    latent = p["b_cat"].shape[1] // 2

    l0, l1, l2 = _make_conv_lhs(h_nhwc)
    act, z = fused_encoder_block(l0, l1, l2, p,
                                 nb=bsz, ho=ho, n_lane=n_lane, latent=latent)

    y4 = act.reshape(ho, bsz, wo, cout)                        # contiguous reshape
    h_nhwc_next = jnp.transpose(y4, (1, 0, 2, 3))              # (B,Ho,Wo,C) bf16
    h_nchw = jnp.transpose(y4, (1, 3, 0, 2)).astype(jnp.float32)  # returned value
    mu, var = z[:, :latent], z[:, latent:]
    return h_nhwc_next, h_nchw, mu, var


def encoder_forward(x_nchw, kernel_params):
    # Public interface keeps PyTorch NCHW: one transpose at the input.
    h_nhwc = jnp.transpose(x_nchw, (0, 2, 3, 1))
    hs, mus, vars_ = [], [], []
    for p in kernel_params:
        h_nhwc, h_nchw, mu, var = encoder_block_forward(h_nhwc, p)
        hs.append(h_nchw)
        mus.append(mu)
        vars_.append(var)
    return hs, mus, vars_


# ---------------------------------------------------------------------------
# Parameter init: PyTorch-layout params + kernel-ready derived params (all the
# weight reshapes / permutations happen ONCE here, not per forward call).
# ---------------------------------------------------------------------------
def _build_conv_row_weights(conv_w, w_in, wo):
    """A[ki, wp*cin+ci, ow*cout+co] = conv_w[co,ci,ki,wp-2*ow] if 0<=wp-2*ow<=2."""
    cout, cin, _, _ = conv_w.shape
    wp_tot = w_in + 2
    a = jnp.zeros((3, wp_tot * cin, wo * cout), jnp.float32)
    for ki in range(3):
        for kj in range(3):
            blk = conv_w[:, :, ki, kj].T                  # (cin, cout)
            for ow in range(wo):
                wp = 2 * ow + kj
                a = a.at[ki, wp * cin:(wp + 1) * cin,
                         ow * cout:(ow + 1) * cout].set(blk)
    return a


def init_encoder_params(key, dims, latent_dim, img_size):
    kparams, tparams = [], []
    hh, ww = img_size
    for i in range(len(dims) - 1):
        ho, wo = hh // 2, ww // 2
        cin, cout, latent = dims[i], dims[i + 1], latent_dim[i]
        feat = cout * ho * wo
        key, k1, k2, k3, k4, k5, k6 = jax.random.split(key, 7)

        # -- PyTorch-equivalent parameters (used by the pure-JAX reference) ---
        conv_w = 0.1 * jax.random.normal(k1, (cout, cin, 3, 3), jnp.float32)
        conv_b = 0.05 * jax.random.normal(k2, (cout,), jnp.float32)
        wm = jax.random.normal(k3, (feat, latent), jnp.float32) / jnp.sqrt(feat)
        bm = 0.05 * jax.random.normal(k4, (1, latent), jnp.float32)
        wv = jax.random.normal(k5, (feat, latent), jnp.float32) / jnp.sqrt(feat)
        bv = 0.05 * jax.random.normal(k6, (1, latent), jnp.float32)
        tparams.append(dict(conv_w=conv_w, conv_b=conv_b, alpha=jnp.float32(0.25),
                            wm=wm, bm=bm, wv=wv, bv=bv))

        # -- kernel-ready parameters (computed once; zero per-forward cost) ---
        n_lane = wo * cout
        a_mat = _build_conv_row_weights(conv_w, ww, wo).astype(MATMUL_DTYPE)
        bias_t = jnp.tile(conv_b.reshape(1, cout), (1, wo))        # (1, N)
        red = jnp.tile(jnp.eye(cout, dtype=jnp.float32), (wo, 1)) / wo   # (N, Cout)
        bcast = jnp.tile(jnp.eye(cout, dtype=jnp.float32), (1, wo))      # (Cout, N)
        # permute fc rows from NCHW-flat to the kernel's (oh, ow, cout) order and
        # fuse fc_mean / fc_var into a single (feat, 2L) weight.
        f = jnp.arange(feat)
        src = (f % cout) * (ho * wo) + (f // cout)
        w_cat = jnp.concatenate([wm[src], wv[src]], axis=1).astype(MATMUL_DTYPE)
        b_cat = jnp.concatenate([bm, bv], axis=1)
        kparams.append(dict(a_mat=a_mat, bias_t=bias_t, red=red, bcast=bcast,
                            alpha=jnp.full((1, 1), 0.25, jnp.float32),
                            w_cat=w_cat, b_cat=b_cat))
        hh, ww = ho, wo
    return kparams, tparams


# ---------------------------------------------------------------------------
# Pure-JAX reference of the PyTorch module (f32), used for a numerics check.
# ---------------------------------------------------------------------------
def reference_forward(x_nchw, torch_params):
    hs, mus, vars_ = [], [], []
    h = x_nchw
    for p in torch_params:
        y = jax.lax.conv_general_dilated(
            h, p["conv_w"], window_strides=(2, 2), padding=((1, 1), (1, 1)),
            dimension_numbers=("NCHW", "OIHW", "NCHW"))
        y = y + p["conv_b"].reshape(1, -1, 1, 1)
        mean = jnp.mean(y, axis=(0, 2, 3), keepdims=True)
        var = jnp.mean((y - mean) ** 2, axis=(0, 2, 3), keepdims=True)
        yh = (y - mean) * jax.lax.rsqrt(var + 1e-5)
        h = jnp.where(yh > 0, yh, p["alpha"] * yh)
        hf = h.reshape(h.shape[0], -1)
        mus.append(hf @ p["wm"] + p["bm"])
        vars_.append(jax.nn.softplus(hf @ p["wv"] + p["bv"]) + 1e-8)
        hs.append(h)
    return hs, mus, vars_


if __name__ == "__main__":
    # Small, module-consistent shapes: x is NCHW (batch=2, channels=4, 16x16).
    dims = [4, 8, 16]
    latent_dim = [6, 5]
    img_size = (16, 16)

    key = jax.random.PRNGKey(0)
    key, kx = jax.random.split(key)
    x = jax.random.normal(kx, (2, dims[0], img_size[0], img_size[1]), jnp.float32)

    kernel_params, torch_params = init_encoder_params(key, dims, latent_dim, img_size)

    fwd = jax.jit(encoder_forward)
    hs, mus, vars_ = fwd(x, kernel_params)
    for t in jax.tree_util.tree_leaves((hs, mus, vars_)):
        t.block_until_ready()

    # shape sanity (block i halves spatial dims, latent_dim[i] outputs)
    assert hs[0].shape == (2, 8, 8, 8) and hs[1].shape == (2, 16, 4, 4)
    assert mus[0].shape == (2, 6) and mus[1].shape == (2, 5)
    assert vars_[0].shape == (2, 6) and vars_[1].shape == (2, 5)
    assert bool(jnp.all(vars_[0] > 0)) and bool(jnp.all(vars_[1] > 0))

    # numerics vs. the pure-JAX reference (Pallas path uses bf16 MXU operands
    # and a bf16 inter-block activation, so the tolerance is loose-ish but
    # still catches any structural error).
    hr, mur, varr = reference_forward(x, torch_params)
    for got, want in zip((*hs, *mus, *vars_), (*hr, *mur, *varr)):
        assert jnp.allclose(got, want, rtol=5e-2, atol=5e-2), (
            float(jnp.max(jnp.abs(got - want))))

    print("KERNEL_OK")
</pallas_src>

<mosaic_0001>
module attributes {stable_mosaic.version = 11 : i64} {
  func.func @_encoder_block_kernel(%arg0: memref<16x72xbf16, #tpu.memory_space<vmem>>, %arg1: memref<16x72xbf16, #tpu.memory_space<vmem>>, %arg2: memref<16x72xbf16, #tpu.memory_space<vmem>>, %arg3: memref<3x72x64xbf16, #tpu.memory_space<vmem>>, %arg4: memref<1x64xf32, #tpu.memory_space<vmem>>, %arg5: memref<64x8xf32, #tpu.memory_space<vmem>>, %arg6: memref<8x64xf32, #tpu.memory_space<vmem>>, %arg7: memref<512x12xbf16, #tpu.memory_space<vmem>>, %arg8: memref<1x12xf32, #tpu.memory_space<vmem>>, %arg9: memref<1x1xf32, #tpu.memory_space<smem>>, %arg10: memref<16x64xbf16, #tpu.memory_space<vmem>>, %arg11: memref<2x12xf32, #tpu.memory_space<vmem>>) attributes {dimension_semantics = [], scalar_prefetch = 0 : i64, scratch_operands = 0 : i64, tpu.core_type = #tpu.core_type<tc>} {
    %c0 = arith.constant 0 : index
    %c0_0 = arith.constant 0 : index
    %0 = vector.load %arg0[%c0, %c0_0] : memref<16x72xbf16, #tpu.memory_space<vmem>>, vector<16x72xbf16>
    %c0_1 = arith.constant 0 : index
    %c0_2 = arith.constant 0 : index
    %c0_3 = arith.constant 0 : index
    %1 = vector.load %arg3[%c0_1, %c0_2, %c0_3] : memref<3x72x64xbf16, #tpu.memory_space<vmem>>, vector<1x72x64xbf16>
    %2 = vector.shape_cast %1 : vector<1x72x64xbf16> to vector<72x64xbf16>
    %cst = arith.constant dense<0.000000e+00> : vector<16x64xf32>
    %3 = tpu.matmul %0, %2, %cst {dimension_numbers = #tpu.dot_dimension_numbers<[1], [0], [0], [1], [0, 0, 1, 1], [], []>} : vector<16x72xbf16>, vector<72x64xbf16>, vector<16x64xf32> -> vector<16x64xf32>
    %c0_4 = arith.constant 0 : index
    %c0_5 = arith.constant 0 : index
    %4 = vector.load %arg1[%c0_4, %c0_5] : memref<16x72xbf16, #tpu.memory_space<vmem>>, vector<16x72xbf16>
    %c1 = arith.constant 1 : index
    %c0_6 = arith.constant 0 : index
    %c0_7 = arith.constant 0 : index
    %5 = vector.load %arg3[%c1, %c0_6, %c0_7] : memref<3x72x64xbf16, #tpu.memory_space<vmem>>, vector<1x72x64xbf16>
    %6 = vector.shape_cast %5 : vector<1x72x64xbf16> to vector<72x64xbf16>
    %cst_8 = arith.constant dense<0.000000e+00> : vector<16x64xf32>
    %7 = tpu.matmul %4, %6, %cst_8 {dimension_numbers = #tpu.dot_dimension_numbers<[1], [0], [0], [1], [0, 0, 1, 1], [], []>} : vector<16x72xbf16>, vector<72x64xbf16>, vector<16x64xf32> -> vector<16x64xf32>
    %8 = arith.addf %3, %7 : vector<16x64xf32>
    %c0_9 = arith.constant 0 : index
    %c0_10 = arith.constant 0 : index
    %9 = vector.load %arg2[%c0_9, %c0_10] : memref<16x72xbf16, #tpu.memory_space<vmem>>, vector<16x72xbf16>
    %c2 = arith.constant 2 : index
    %c0_11 = arith.constant 0 : index
    %c0_12 = arith.constant 0 : index
    %10 = vector.load %arg3[%c2, %c0_11, %c0_12] : memref<3x72x64xbf16, #tpu.memory_space<vmem>>, vector<1x72x64xbf16>
    %11 = vector.shape_cast %10 : vector<1x72x64xbf16> to vector<72x64xbf16>
    %cst_13 = arith.constant dense<0.000000e+00> : vector<16x64xf32>
    %12 = tpu.matmul %9, %11, %cst_13 {dimension_numbers = #tpu.dot_dimension_numbers<[1], [0], [0], [1], [0, 0, 1, 1], [], []>} : vector<16x72xbf16>, vector<72x64xbf16>, vector<16x64xf32> -> vector<16x64xf32>
    %13 = arith.addf %8, %12 : vector<16x64xf32>
    %c0_14 = arith.constant 0 : index
    %c0_15 = arith.constant 0 : index
    %14 = vector.load %arg4[%c0_14, %c0_15] : memref<1x64xf32, #tpu.memory_space<vmem>>, vector<1x64xf32>
    %15 = vector.broadcast %14 : vector<1x64xf32> to vector<16x64xf32>
    %16 = arith.addf %13, %15 : vector<16x64xf32>
    %cst_16 = arith.constant dense<0.000000e+00> : vector<64xf32>
    %17 = vector.multi_reduction <add>, %16, %cst_16 [0] : vector<16x64xf32> to vector<64xf32>
    %18 = vector.shape_cast %17 : vector<64xf32> to vector<1x64xf32>
    %cst_17 = arith.constant 1.600000e+01 : f32
    %19 = vector.broadcast %cst_17 : f32 to vector<1x64xf32>
    %20 = arith.divf %18, %19 : vector<1x64xf32>
    %c0_18 = arith.constant 0 : index
    %c0_19 = arith.constant 0 : index
    %21 = vector.load %arg5[%c0_18, %c0_19] : memref<64x8xf32, #tpu.memory_space<vmem>>, vector<64x8xf32>
    %cst_20 = arith.constant dense<0.000000e+00> : vector<1x8xf32>
    %22 = tpu.matmul %20, %21, %cst_20 {dimension_numbers = #tpu.dot_dimension_numbers<[1], [0], [0], [1], [0, 0, 1, 1], [], []>} : vector<1x64xf32>, vector<64x8xf32>, vector<1x8xf32> -> vector<1x8xf32>
    %c0_21 = arith.constant 0 : index
    %c0_22 = arith.constant 0 : index
    %23 = vector.load %arg6[%c0_21, %c0_22] : memref<8x64xf32, #tpu.memory_space<vmem>>, vector<8x64xf32>
    %cst_23 = arith.constant dense<0.000000e+00> : vector<1x64xf32>
    %24 = tpu.matmul %22, %23, %cst_23 {dimension_numbers = #tpu.dot_dimension_numbers<[1], [0], [0], [1], [0, 0, 1, 1], [], []>} : vector<1x8xf32>, vector<8x64xf32>, vector<1x64xf32> -> vector<1x64xf32>
    %25 = vector.broadcast %24 : vector<1x64xf32> to vector<16x64xf32>
    %26 = arith.subf %16, %25 : vector<16x64xf32>
    %27 = arith.mulf %26, %26 : vector<16x64xf32>
    %cst_24 = arith.constant dense<0.000000e+00> : vector<64xf32>
    %28 = vector.multi_reduction <add>, %27, %cst_24 [0] : vector<16x64xf32> to vector<64xf32>
    %29 = vector.shape_cast %28 : vector<64xf32> to vector<1x64xf32>
    %cst_25 = arith.constant 1.600000e+01 : f32
    %30 = vector.broadcast %cst_25 : f32 to vector<1x64xf32>
    %31 = arith.divf %29, %30 : vector<1x64xf32>
    %c0_26 = arith.constant 0 : index
    %c0_27 = arith.constant 0 : index
    %32 = vector.load %arg5[%c0_26, %c0_27] : memref<64x8xf32, #tpu.memory_space<vmem>>, vector<64x8xf32>
    %cst_28 = arith.constant dense<0.000000e+00> : vector<1x8xf32>
    %33 = tpu.matmul %31, %32, %cst_28 {dimension_numbers = #tpu.dot_dimension_numbers<[1], [0], [0], [1], [0, 0, 1, 1], [], []>} : vector<1x64xf32>, vector<64x8xf32>, vector<1x8xf32> -> vector<1x8xf32>
    %c0_29 = arith.constant 0 : index
    %c0_30 = arith.constant 0 : index
    %34 = vector.load %arg6[%c0_29, %c0_30] : memref<8x64xf32, #tpu.memory_space<vmem>>, vector<8x64xf32>
    %cst_31 = arith.constant dense<0.000000e+00> : vector<1x64xf32>
    %35 = tpu.matmul %33, %34, %cst_31 {dimension_numbers = #tpu.dot_dimension_numbers<[1], [0], [0], [1], [0, 0, 1, 1], [], []>} : vector<1x8xf32>, vector<8x64xf32>, vector<1x64xf32> -> vector<1x64xf32>
    %cst_32 = arith.constant 9.99999974E-6 : f32
    %36 = vector.broadcast %cst_32 : f32 to vector<1x64xf32>
    %37 = arith.addf %35, %36 : vector<1x64xf32>
    %38 = math.rsqrt %37 : vector<1x64xf32>
    %39 = vector.broadcast %38 : vector<1x64xf32> to vector<16x64xf32>
    %40 = arith.mulf %26, %39 : vector<16x64xf32>
    %c0_33 = arith.constant 0 : index
    %c0_34 = arith.constant 0 : index
    %41 = memref.load %arg9[%c0_33, %c0_34] : memref<1x1xf32, #tpu.memory_space<smem>>
    %cst_35 = arith.constant 0.000000e+00 : f32
    %42 = vector.broadcast %cst_35 : f32 to vector<16x64xf32>
    %43 = arith.cmpf ogt, %40, %42 : vector<16x64xf32>
    %44 = vector.broadcast %41 : f32 to vector<16x64xf32>
    %45 = arith.mulf %44, %40 : vector<16x64xf32>
    %46 = arith.select %43, %40, %45 : vector<16x64xi1>, vector<16x64xf32>
    %47 = arith.truncf %46 : vector<16x64xf32> to vector<16x64xbf16>
    %c0_36 = arith.constant 0 : index
    %c0_37 = arith.constant 0 : index
    %48 = vector.load %arg10[%c0_36, %c0_37] : memref<16x64xbf16, #tpu.memory_space<vmem>>, vector<16x64xbf16>
    tpu.vector_store %arg10[%c0_36, %c0_37], %47 {strides = array<i32>} : memref<16x64xbf16, #tpu.memory_space<vmem>>, vector<16x64xbf16>,
    %cst_38 = arith.constant 0.000000e+00 : f32
    %49 = vector.broadcast %cst_38 : f32 to vector<2x12xf32>
    %c0_39 = arith.constant 0 : index
    %c0_40 = arith.constant 0 : index
    %50 = vector.load %arg10[%c0_39, %c0_40] : memref<16x64xbf16, #tpu.memory_space<vmem>>, vector<2x64xbf16>
    %c0_41 = arith.constant 0 : index
    %c0_42 = arith.constant 0 : index
    %51 = vector.load %arg7[%c0_41, %c0_42] : memref<512x12xbf16, #tpu.memory_space<vmem>>, vector<64x12xbf16>
    %cst_43 = arith.constant dense<0.000000e+00> : vector<2x12xf32>
    %52 = tpu.matmul %50, %51, %cst_43 {dimension_numbers = #tpu.dot_dimension_numbers<[1], [0], [0], [1], [0, 0, 1, 1], [], []>} : vector<2x64xbf16>, vector<64x12xbf16>, vector<2x12xf32> -> vector<2x12xf32>
    %53 = arith.addf %49, %52 : vector<2x12xf32>
    %c2_44 = arith.constant 2 : index
    %c0_45 = arith.constant 0 : index
    %54 = vector.load %arg10[%c2_44, %c0_45] : memref<16x64xbf16, #tpu.memory_space<vmem>>, vector<2x64xbf16>
    %c64 = arith.constant 64 : index
    %c0_46 = arith.constant 0 : index
    %55 = vector.load %arg7[%c64, %c0_46] : memref<512x12xbf16, #tpu.memory_space<vmem>>, vector<64x12xbf16>
    %cst_47 = arith.constant dense<0.000000e+00> : vector<2x12xf32>
    %56 = tpu.matmul %54, %55, %cst_47 {dimension_numbers = #tpu.dot_dimension_numbers<[1], [0], [0], [1], [0, 0, 1, 1], [], []>} : vector<2x64xbf16>, vector<64x12xbf16>, vector<2x12xf32> -> vector<2x12xf32>
    %57 = arith.addf %53, %56 : vector<2x12xf32>
    %c4 = arith.constant 4 : index
    %c0_48 = arith.constant 0 : index
    %58 = vector.load %arg10[%c4, %c0_48] : memref<16x64xbf16, #tpu.memory_space<vmem>>, vector<2x64xbf16>
    %c128 = arith.constant 128 : index
    %c0_49 = arith.constant 0 : index
    %59 = vector.load %arg7[%c128, %c0_49] : memref<512x12xbf16, #tpu.memory_space<vmem>>, vector<64x12xbf16>
    %cst_50 = arith.constant dense<0.000000e+00> : vector<2x12xf32>
    %60 = tpu.matmul %58, %59, %cst_50 {dimension_numbers = #tpu.dot_dimension_numbers<[1], [0], [0], [1], [0, 0, 1, 1], [], []>} : vector<2x64xbf16>, vector<64x12xbf16>, vector<2x12xf32> -> vector<2x12xf32>
    %61 = arith.addf %57, %60 : vector<2x12xf32>
    %c6 = arith.constant 6 : index
    %c0_51 = arith.constant 0 : index
    %62 = vector.load %arg10[%c6, %c0_51] : memref<16x64xbf16, #tpu.memory_space<vmem>>, vector<2x64xbf16>
    %c192 = arith.constant 192 : index
    %c0_52 = arith.constant 0 : index
    %63 = vector.load %arg7[%c192, %c0_52] : memref<512x12xbf16, #tpu.memory_space<vmem>>, vector<64x12xbf16>
    %cst_53 = arith.constant dense<0.000000e+00> : vector<2x12xf32>
    %64 = tpu.matmul %62, %63, %cst_53 {dimension_numbers = #tpu.dot_dimension_numbers<[1], [0], [0], [1], [0, 0, 1, 1], [], []>} : vector<2x64xbf16>, vector<64x12xbf16>, vector<2x12xf32> -> vector<2x12xf32>
    %65 = arith.addf %61, %64 : vector<2x12xf32>
    %c8 = arith.constant 8 : index
    %c0_54 = arith.constant 0 : index
    %66 = vector.load %arg10[%c8, %c0_54] : memref<16x64xbf16, #tpu.memory_space<vmem>>, vector<2x64xbf16>
    %c256 = arith.constant 256 : index
    %c0_55 = arith.constant 0 : index
    %67 = vector.load %arg7[%c256, %c0_55] : memref<512x12xbf16, #tpu.memory_space<vmem>>, vector<64x12xbf16>
    %cst_56 = arith.constant dense<0.000000e+00> : vector<2x12xf32>
    %68 = tpu.matmul %66, %67, %cst_56 {dimension_numbers = #tpu.dot_dimension_numbers<[1], [0], [0], [1], [0, 0, 1, 1], [], []>} : vector<2x64xbf16>, vector<64x12xbf16>, vector<2x12xf32> -> vector<2x12xf32>
    %69 = arith.addf %65, %68 : vector<2x12xf32>
    %c10 = arith.constant 10 : index
    %c0_57 = arith.constant 0 : index
    %70 = vector.load %arg10[%c10, %c0_57] : memref<16x64xbf16, #tpu.memory_space<vmem>>, vector<2x64xbf16>
    %c320 = arith.constant 320 : index
    %c0_58 = arith.constant 0 : index
    %71 = vector.load %arg7[%c320, %c0_58] : memref<512x12xbf16, #tpu.memory_space<vmem>>, vector<64x12xbf16>
    %cst_59 = arith.constant dense<0.000000e+00> : vector<2x12xf32>
    %72 = tpu.matmul %70, %71, %cst_59 {dimension_numbers = #tpu.dot_dimension_numbers<[1], [0], [0], [1], [0, 0, 1, 1], [], []>} : vector<2x64xbf16>, vector<64x12xbf16>, vector<2x12xf32> -> vector<2x12xf32>
    %73 = arith.addf %69, %72 : vector<2x12xf32>
    %c12 = arith.constant 12 : index
    %c0_60 = arith.constant 0 : index
    %74 = vector.load %arg10[%c12, %c0_60] : memref<16x64xbf16, #tpu.memory_space<vmem>>, vector<2x64xbf16>
    %c384 = arith.constant 384 : index
    %c0_61 = arith.constant 0 : index
    %75 = vector.load %arg7[%c384, %c0_61] : memref<512x12xbf16, #tpu.memory_space<vmem>>, vector<64x12xbf16>
    %cst_62 = arith.constant dense<0.000000e+00> : vector<2x12xf32>
    %76 = tpu.matmul %74, %75, %cst_62 {dimension_numbers = #tpu.dot_dimension_numbers<[1], [0], [0], [1], [0, 0, 1, 1], [], []>} : vector<2x64xbf16>, vector<64x12xbf16>, vector<2x12xf32> -> vector<2x12xf32>
    %77 = arith.addf %73, %76 : vector<2x12xf32>
    %c14 = arith.constant 14 : index
    %c0_63 = arith.constant 0 : index
    %78 = vector.load %arg10[%c14, %c0_63] : memref<16x64xbf16, #tpu.memory_space<vmem>>, vector<2x64xbf16>
    %c448 = arith.constant 448 : index
    %c0_64 = arith.constant 0 : index
    %79 = vector.load %arg7[%c448, %c0_64] : memref<512x12xbf16, #tpu.memory_space<vmem>>, vector<64x12xbf16>
    %cst_65 = arith.constant dense<0.000000e+00> : vector<2x12xf32>
    %80 = tpu.matmul %78, %79, %cst_65 {dimension_numbers = #tpu.dot_dimension_numbers<[1], [0], [0], [1], [0, 0, 1, 1], [], []>} : vector<2x64xbf16>, vector<64x12xbf16>, vector<2x12xf32> -> vector<2x12xf32>
    %81 = arith.addf %77, %80 : vector<2x12xf32>
    %c0_66 = arith.constant 0 : index
    %c0_67 = arith.constant 0 : index
    %82 = vector.load %arg8[%c0_66, %c0_67] : memref<1x12xf32, #tpu.memory_space<vmem>>, vector<1x12xf32>
    %83 = vector.broadcast %82 : vector<1x12xf32> to vector<2x12xf32>
    %84 = arith.addf %81, %83 : vector<2x12xf32>
    %cst_68 = arith.constant 0.000000e+00 : f32
    %85 = vector.broadcast %cst_68 : f32 to vector<2x12xf32>
    %86 = arith.maximumf %84, %85 : vector<2x12xf32>
    %87 = math.absf %84 : vector<2x12xf32>
    %cst_69 = arith.constant 0.000000e+00 : f32
    %88 = vector.broadcast %cst_69 : f32 to vector<2x12xf32>
    %89 = arith.subf %88, %87 : vector<2x12xf32>
    %90 = math.exp %89 : vector<2x12xf32>
    %91 = math.log1p %90 : vector<2x12xf32>
    %92 = arith.addf %86, %91 : vector<2x12xf32>
    %cst_70 = arith.constant 9.99999993E-9 : f32
    %93 = vector.broadcast %cst_70 : f32 to vector<2x12xf32>
    %94 = arith.addf %92, %93 : vector<2x12xf32>
    %95 = tpu.iota {dimensions = array<i32: 1>} : vector<2x12xi32>
    %c6_i32 = arith.constant 6 : i32
    %96 = vector.broadcast %c6_i32 : i32 to vector<2x12xi32>
    %97 = arith.cmpi slt, %95, %96 : vector<2x12xi32>
    %98 = arith.select %97, %84, %94 : vector<2x12xi1>, vector<2x12xf32>
    %c0_71 = arith.constant 0 : index
    %c0_72 = arith.constant 0 : index
    %99 = vector.load %arg11[%c0_71, %c0_72] : memref<2x12xf32, #tpu.memory_space<vmem>>, vector<2x12xf32>
    tpu.vector_store %arg11[%c0_71, %c0_72], %98 {strides = array<i32>} : memref<2x12xf32, #tpu.memory_space<vmem>>, vector<2x12xf32>,
    return
  }
}

module attributes {stable_mosaic.version = 11 : i64} {
  func.func @_encoder_block_kernel(%arg0: memref<8x80xbf16, #tpu.memory_space<vmem>>, %arg1: memref<8x80xbf16, #tpu.memory_space<vmem>>, %arg2: memref<8x80xbf16, #tpu.memory_space<vmem>>, %arg3: memref<3x80x64xbf16, #tpu.memory_space<vmem>>, %arg4: memref<1x64xf32, #tpu.memory_space<vmem>>, %arg5: memref<64x16xf32, #tpu.memory_space<vmem>>, %arg6: memref<16x64xf32, #tpu.memory_space<vmem>>, %arg7: memref<256x10xbf16, #tpu.memory_space<vmem>>, %arg8: memref<1x10xf32, #tpu.memory_space<vmem>>, %arg9: memref<1x1xf32, #tpu.memory_space<smem>>, %arg10: memref<8x64xbf16, #tpu.memory_space<vmem>>, %arg11: memref<2x10xf32, #tpu.memory_space<vmem>>) attributes {dimension_semantics = [], scalar_prefetch = 0 : i64, scratch_operands = 0 : i64, tpu.core_type = #tpu.core_type<tc>} {
    %c0 = arith.constant 0 : index
    %c0_0 = arith.constant 0 : index
    %0 = vector.load %arg0[%c0, %c0_0] : memref<8x80xbf16, #tpu.memory_space<vmem>>, vector<8x80xbf16>
    %c0_1 = arith.constant 0 : index
    %c0_2 = arith.constant 0 : index
    %c0_3 = arith.constant 0 : index
    %1 = vector.load %arg3[%c0_1, %c0_2, %c0_3] : memref<3x80x64xbf16, #tpu.memory_space<vmem>>, vector<1x80x64xbf16>
    %2 = vector.shape_cast %1 : vector<1x80x64xbf16> to vector<80x64xbf16>
    %cst = arith.constant dense<0.000000e+00> : vector<8x64xf32>
    %3 = tpu.matmul %0, %2, %cst {dimension_numbers = #tpu.dot_dimension_numbers<[1], [0], [0], [1], [0, 0, 1, 1], [], []>} : vector<8x80xbf16>, vector<80x64xbf16>, vector<8x64xf32> -> vector<8x64xf32>
    %c0_4 = arith.constant 0 : index
    %c0_5 = arith.constant 0 : index
    %4 = vector.load %arg1[%c0_4, %c0_5] : memref<8x80xbf16, #tpu.memory_space<vmem>>, vector<8x80xbf16>
    %c1 = arith.constant 1 : index
    %c0_6 = arith.constant 0 : index
    %c0_7 = arith.constant 0 : index
    %5 = vector.load %arg3[%c1, %c0_6, %c0_7] : memref<3x80x64xbf16, #tpu.memory_space<vmem>>, vector<1x80x64xbf16>
    %6 = vector.shape_cast %5 : vector<1x80x64xbf16> to vector<80x64xbf16>
    %cst_8 = arith.constant dense<0.000000e+00> : vector<8x64xf32>
    %7 = tpu.matmul %4, %6, %cst_8 {dimension_numbers = #tpu.dot_dimension_numbers<[1], [0], [0], [1], [0, 0, 1, 1], [], []>} : vector<8x80xbf16>, vector<80x64xbf16>, vector<8x64xf32> -> vector<8x64xf32>
    %8 = arith.addf %3, %7 : vector<8x64xf32>
    %c0_9 = arith.constant 0 : index
    %c0_10 = arith.constant 0 : index
    %9 = vector.load %arg2[%c0_9, %c0_10] : memref<8x80xbf16, #tpu.memory_space<vmem>>, vector<8x80xbf16>
    %c2 = arith.constant 2 : index
    %c0_11 = arith.constant 0 : index
    %c0_12 = arith.constant 0 : index
    %10 = vector.load %arg3[%c2, %c0_11, %c0_12] : memref<3x80x64xbf16, #tpu.memory_space<vmem>>, vector<1x80x64xbf16>
    %11 = vector.shape_cast %10 : vector<1x80x64xbf16> to vector<80x64xbf16>
    %cst_13 = arith.constant dense<0.000000e+00> : vector<8x64xf32>
    %12 = tpu.matmul %9, %11, %cst_13 {dimension_numbers = #tpu.dot_dimension_numbers<[1], [0], [0], [1], [0, 0, 1, 1], [], []>} : vector<8x80xbf16>, vector<80x64xbf16>, vector<8x64xf32> -> vector<8x64xf32>
    %13 = arith.addf %8, %12 : vector<8x64xf32>
    %c0_14 = arith.constant 0 : index
    %c0_15 = arith.constant 0 : index
    %14 = vector.load %arg4[%c0_14, %c0_15] : memref<1x64xf32, #tpu.memory_space<vmem>>, vector<1x64xf32>
    %15 = vector.broadcast %14 : vector<1x64xf32> to vector<8x64xf32>
    %16 = arith.addf %13, %15 : vector<8x64xf32>
    %cst_16 = arith.constant dense<0.000000e+00> : vector<64xf32>
    %17 = vector.multi_reduction <add>, %16, %cst_16 [0] : vector<8x64xf32> to vector<64xf32>
    %18 = vector.shape_cast %17 : vector<64xf32> to vector<1x64xf32>
    %cst_17 = arith.constant 8.000000e+00 : f32
    %19 = vector.broadcast %cst_17 : f32 to vector<1x64xf32>
    %20 = arith.divf %18, %19 : vector<1x64xf32>
    %c0_18 = arith.constant 0 : index
    %c0_19 = arith.constant 0 : index
    %21 = vector.load %arg5[%c0_18, %c0_19] : memref<64x16xf32, #tpu.memory_space<vmem>>, vector<64x16xf32>
    %cst_20 = arith.constant dense<0.000000e+00> : vector<1x16xf32>
    %22 = tpu.matmul %20, %21, %cst_20 {dimension_numbers = #tpu.dot_dimension_numbers<[1], [0], [0], [1], [0, 0, 1, 1], [], []>} : vector<1x64xf32>, vector<64x16xf32>, vector<1x16xf32> -> vector<1x16xf32>
    %c0_21 = arith.constant 0 : index
    %c0_22 = arith.constant 0 : index
    %23 = vector.load %arg6[%c0_21, %c0_22] : memref<16x64xf32, #tpu.memory_space<vmem>>, vector<16x64xf32>
    %cst_23 = arith.constant dense<0.000000e+00> : vector<1x64xf32>
    %24 = tpu.matmul %22, %23, %cst_23 {dimension_numbers = #tpu.dot_dimension_numbers<[1], [0], [0], [1], [0, 0, 1, 1], [], []>} : vector<1x16xf32>, vector<16x64xf32>, vector<1x64xf32> -> vector<1x64xf32>
    %25 = vector.broadcast %24 : vector<1x64xf32> to vector<8x64xf32>
    %26 = arith.subf %16, %25 : vector<8x64xf32>
    %27 = arith.mulf %26, %26 : vector<8x64xf32>
    %cst_24 = arith.constant dense<0.000000e+00> : vector<64xf32>
    %28 = vector.multi_reduction <add>, %27, %cst_24 [0] : vector<8x64xf32> to vector<64xf32>
    %29 = vector.shape_cast %28 : vector<64xf32> to vector<1x64xf32>
    %cst_25 = arith.constant 8.000000e+00 : f32
    %30 = vector.broadcast %cst_25 : f32 to vector<1x64xf32>
    %31 = arith.divf %29, %30 : vector<1x64xf32>
    %c0_26 = arith.constant 0 : index
    %c0_27 = arith.constant 0 : index
    %32 = vector.load %arg5[%c0_26, %c0_27] : memref<64x16xf32, #tpu.memory_space<vmem>>, vector<64x16xf32>
    %cst_28 = arith.constant dense<0.000000e+00> : vector<1x16xf32>
    %33 = tpu.matmul %31, %32, %cst_28 {dimension_numbers = #tpu.dot_dimension_numbers<[1], [0], [0], [1], [0, 0, 1, 1], [], []>} : vector<1x64xf32>, vector<64x16xf32>, vector<1x16xf32> -> vector<1x16xf32>
    %c0_29 = arith.constant 0 : index
    %c0_30 = arith.constant 0 : index
    %34 = vector.load %arg6[%c0_29, %c0_30] : memref<16x64xf32, #tpu.memory_space<vmem>>, vector<16x64xf32>
    %cst_31 = arith.constant dense<0.000000e+00> : vector<1x64xf32>
    %35 = tpu.matmul %33, %34, %cst_31 {dimension_numbers = #tpu.dot_dimension_numbers<[1], [0], [0], [1], [0, 0, 1, 1], [], []>} : vector<1x16xf32>, vector<16x64xf32>, vector<1x64xf32> -> vector<1x64xf32>
    %cst_32 = arith.constant 9.99999974E-6 : f32
    %36 = vector.broadcast %cst_32 : f32 to vector<1x64xf32>
    %37 = arith.addf %35, %36 : vector<1x64xf32>
    %38 = math.rsqrt %37 : vector<1x64xf32>
    %39 = vector.broadcast %38 : vector<1x64xf32> to vector<8x64xf32>
    %40 = arith.mulf %26, %39 : vector<8x64xf32>
    %c0_33 = arith.constant 0 : index
    %c0_34 = arith.constant 0 : index
    %41 = memref.load %arg9[%c0_33, %c0_34] : memref<1x1xf32, #tpu.memory_space<smem>>
    %cst_35 = arith.constant 0.000000e+00 : f32
    %42 = vector.broadcast %cst_35 : f32 to vector<8x64xf32>
    %43 = arith.cmpf ogt, %40, %42 : vector<8x64xf32>
    %44 = vector.broadcast %41 : f32 to vector<8x64xf32>
    %45 = arith.mulf %44, %40 : vector<8x64xf32>
    %46 = arith.select %43, %40, %45 : vector<8x64xi1>, vector<8x64xf32>
    %47 = arith.truncf %46 : vector<8x64xf32> to vector<8x64xbf16>
    %c0_36 = arith.constant 0 : index
    %c0_37 = arith.constant 0 : index
    %48 = vector.load %arg10[%c0_36, %c0_37] : memref<8x64xbf16, #tpu.memory_space<vmem>>, vector<8x64xbf16>
    tpu.vector_store %arg10[%c0_36, %c0_37], %47 {strides = array<i32>} : memref<8x64xbf16, #tpu.memory_space<vmem>>, vector<8x64xbf16>,
    %cst_38 = arith.constant 0.000000e+00 : f32
    %49 = vector.broadcast %cst_38 : f32 to vector<2x10xf32>
    %c0_39 = arith.constant 0 : index
    %c0_40 = arith.constant 0 : index
    %50 = vector.load %arg10[%c0_39, %c0_40] : memref<8x64xbf16, #tpu.memory_space<vmem>>, vector<2x64xbf16>
    %c0_41 = arith.constant 0 : index
    %c0_42 = arith.constant 0 : index
    %51 = vector.load %arg7[%c0_41, %c0_42] : memref<256x10xbf16, #tpu.memory_space<vmem>>, vector<64x10xbf16>
    %cst_43 = arith.constant dense<0.000000e+00> : vector<2x10xf32>
    %52 = tpu.matmul %50, %51, %cst_43 {dimension_numbers = #tpu.dot_dimension_numbers<[1], [0], [0], [1], [0, 0, 1, 1], [], []>} : vector<2x64xbf16>, vector<64x10xbf16>, vector<2x10xf32> -> vector<2x10xf32>
    %53 = arith.addf %49, %52 : vector<2x10xf32>
    %c2_44 = arith.constant 2 : index
    %c0_45 = arith.constant 0 : index
    %54 = vector.load %arg10[%c2_44, %c0_45] : memref<8x64xbf16, #tpu.memory_space<vmem>>, vector<2x64xbf16>
    %c64 = arith.constant 64 : index
    %c0_46 = arith.constant 0 : index
    %55 = vector.load %arg7[%c64, %c0_46] : memref<256x10xbf16, #tpu.memory_space<vmem>>, vector<64x10xbf16>
    %cst_47 = arith.constant dense<0.000000e+00> : vector<2x10xf32>
    %56 = tpu.matmul %54, %55, %cst_47 {dimension_numbers = #tpu.dot_dimension_numbers<[1], [0], [0], [1], [0, 0, 1, 1], [], []>} : vector<2x64xbf16>, vector<64x10xbf16>, vector<2x10xf32> -> vector<2x10xf32>
    %57 = arith.addf %53, %56 : vector<2x10xf32>
    %c4 = arith.constant 4 : index
    %c0_48 = arith.constant 0 : index
    %58 = vector.load %arg10[%c4, %c0_48] : memref<8x64xbf16, #tpu.memory_space<vmem>>, vector<2x64xbf16>
    %c128 = arith.constant 128 : index
    %c0_49 = arith.constant 0 : index
    %59 = vector.load %arg7[%c128, %c0_49] : memref<256x10xbf16, #tpu.memory_space<vmem>>, vector<64x10xbf16>
    %cst_50 = arith.constant dense<0.000000e+00> : vector<2x10xf32>
    %60 = tpu.matmul %58, %59, %cst_50 {dimension_numbers = #tpu.dot_dimension_numbers<[1], [0], [0], [1], [0, 0, 1, 1], [], []>} : vector<2x64xbf16>, vector<64x10xbf16>, vector<2x10xf32> -> vector<2x10xf32>
    %61 = arith.addf %57, %60 : vector<2x10xf32>
    %c6 = arith.constant 6 : index
    %c0_51 = arith.constant 0 : index
    %62 = vector.load %arg10[%c6, %c0_51] : memref<8x64xbf16, #tpu.memory_space<vmem>>, vector<2x64xbf16>
    %c192 = arith.constant 192 : index
    %c0_52 = arith.constant 0 : index
    %63 = vector.load %arg7[%c192, %c0_52] : memref<256x10xbf16, #tpu.memory_space<vmem>>, vector<64x10xbf16>
    %cst_53 = arith.constant dense<0.000000e+00> : vector<2x10xf32>
    %64 = tpu.matmul %62, %63, %cst_53 {dimension_numbers = #tpu.dot_dimension_numbers<[1], [0], [0], [1], [0, 0, 1, 1], [], []>} : vector<2x64xbf16>, vector<64x10xbf16>, vector<2x10xf32> -> vector<2x10xf32>
    %65 = arith.addf %61, %64 : vector<2x10xf32>
    %c0_54 = arith.constant 0 : index
    %c0_55 = arith.constant 0 : index
    %66 = vector.load %arg8[%c0_54, %c0_55] : memref<1x10xf32, #tpu.memory_space<vmem>>, vector<1x10xf32>
    %67 = vector.broadcast %66 : vector<1x10xf32> to vector<2x10xf32>
    %68 = arith.addf %65, %67 : vector<2x10xf32>
    %cst_56 = arith.constant 0.000000e+00 : f32
    %69 = vector.broadcast %cst_56 : f32 to vector<2x10xf32>
    %70 = arith.maximumf %68, %69 : vector<2x10xf32>
    %71 = math.absf %68 : vector<2x10xf32>
    %cst_57 = arith.constant 0.000000e+00 : f32
    %72 = vector.broadcast %cst_57 : f32 to vector<2x10xf32>
    %73 = arith.subf %72, %71 : vector<2x10xf32>
    %74 = math.exp %73 : vector<2x10xf32>
    %75 = math.log1p %74 : vector<2x10xf32>
    %76 = arith.addf %70, %75 : vector<2x10xf32>
    %cst_58 = arith.constant 9.99999993E-9 : f32
    %77 = vector.broadcast %cst_58 : f32 to vector<2x10xf32>
    %78 = arith.addf %76, %77 : vector<2x10xf32>
    %79 = tpu.iota {dimensions = array<i32: 1>} : vector<2x10xi32>
    %c5_i32 = arith.constant 5 : i32
    %80 = vector.broadcast %c5_i32 : i32 to vector<2x10xi32>
    %81 = arith.cmpi slt, %79, %80 : vector<2x10xi32>
    %82 = arith.select %81, %68, %78 : vector<2x10xi1>, vector<2x10xf32>
    %c0_59 = arith.constant 0 : index
    %c0_60 = arith.constant 0 : index
    %83 = vector.load %arg11[%c0_59, %c0_60] : memref<2x10xf32, #tpu.memory_space<vmem>>, vector<2x10xf32>
    tpu.vector_store %arg11[%c0_59, %c0_60], %82 {strides = array<i32>} : memref<2x10xf32, #tpu.memory_space<vmem>>, vector<2x10xf32>,
    return
  }
}

</mosaic_0001>

<llo_original>
// kernel: encoder_forward.3
$region0: #{encoder_forward.3}
  #allocation0 [shape = 'u32[]', space=smem, size = 0x4, offset = 0x4, fixed_abs, tag = 'smem constant byte address 0x4 - core index']
  #allocation1 [shape = 'u32[144,128]{1,0:T(1,128)}', space=vmem, size = 0x12000, scoped, tag = 'internal scratch']
  #allocation2 [shape = 'f32[1,1]{1,0:T(1,128)S(6)}', space=smem, size = 0x200, scoped, tag = 'scoped memory for encoder_forward.3']
  %s0 = inlined_call_operand.vmem [shape: bf16[8,80], index: 0, kind: input, shape index: {}]
  %s1 = inlined_call_operand.vmem [shape: bf16[8,80], index: 1, kind: input, shape index: {}]
  %s2 = inlined_call_operand.vmem [shape: bf16[8,80], index: 2, kind: input, shape index: {}]
  %s3 = inlined_call_operand.vmem [shape: bf16[3,80,64], index: 3, kind: input, shape index: {}]
  %s4 = inlined_call_operand.vmem [shape: f32[1,64], index: 4, kind: input, shape index: {}]
  %s5 = inlined_call_operand.vmem [shape: f32[64,16], index: 5, kind: input, shape index: {}]
  %s6 = inlined_call_operand.vmem [shape: f32[16,64], index: 6, kind: input, shape index: {}]
  %s7 = inlined_call_operand.vmem [shape: bf16[256,10], index: 7, kind: input, shape index: {}]
  %s8 = inlined_call_operand.vmem [shape: f32[1,10], index: 8, kind: input, shape index: {}]
  %s9 = inlined_call_operand.<no memory space> [shape: f32[1,1], index: 9, kind: input, shape index: {}]
  %s10 = inlined_call_operand.vmem [shape: bf16[8,64], index: 10, kind: output, shape index: {0}]
  %s11 = inlined_call_operand.vmem [shape: f32[2,10], index: 11, kind: output, shape index: {1}]
  %12 = xla_tuple %s10, %s11
  %s13 = sld [smem:[#allocation0]]
  $region58: #{encoder_forward.3} parent=0
    _
  %s15 = ssub.s32 1, %s13
  %s16 = scalar_select 0, %s15, %s13
  %17 = sst [smem:[#allocation2]] %s9
  // Predicated region
  $region2: #{encoder_forward.3} parent=0 // pred_check
    _
  $region3: #{encoder_forward.3} parent=0 // pred_check_branch
    %19 = sbr.rel (0) target = $region5
  $region4: #{encoder_forward.3} parent=0 // pred_region
    _
  $region5: #{encoder_forward.3} parent=0 // pred_fallthru
    _
  // Predicated region
  $region6: #{encoder_forward.3} parent=0 // pred_check
    _
  $region7: #{encoder_forward.3} parent=0 // pred_check_branch
    %21 = sbr.rel (0) target = $region9
  $region8: #{encoder_forward.3} parent=0 // pred_region
    _
  $region9: #{encoder_forward.3} parent=0 // pred_fallthru
    _
  // Predicated region
  $region10: #{encoder_forward.3} parent=0 // pred_check
    _
  $region11: #{encoder_forward.3} parent=0 // pred_check_branch
    %23 = sbr.rel (0) target = $region13
  $region12: #{encoder_forward.3} parent=0 // pred_region
    _
  $region13: #{encoder_forward.3} parent=0 // pred_fallthru
    _
  // Predicated region
  $region14: #{encoder_forward.3} parent=0 // pred_check
    _
  $region15: #{encoder_forward.3} parent=0 // pred_check_branch
    %25 = sbr.rel (0) target = $region17
  $region16: #{encoder_forward.3} parent=0 // pred_region
    _
  $region17: #{encoder_forward.3} parent=0 // pred_fallthru
    _
  // Predicated region
  $region18: #{encoder_forward.3} parent=0 // pred_check
    _
  $region19: #{encoder_forward.3} parent=0 // pred_check_branch
    %27 = sbr.rel (0) target = $region21
  $region20: #{encoder_forward.3} parent=0 // pred_region
    _
  $region21: #{encoder_forward.3} parent=0 // pred_fallthru
    _
  // Predicated region
  $region22: #{encoder_forward.3} parent=0 // pred_check
    _
  $region23: #{encoder_forward.3} parent=0 // pred_check_branch
    %29 = sbr.rel (0) target = $region25
  $region24: #{encoder_forward.3} parent=0 // pred_region
    _
  $region25: #{encoder_forward.3} parent=0 // pred_fallthru
    _
  // Predicated region
  $region26: #{encoder_forward.3} parent=0 // pred_check
    _
  $region27: #{encoder_forward.3} parent=0 // pred_check_branch
    %31 = sbr.rel (0) target = $region29
  $region28: #{encoder_forward.3} parent=0 // pred_region
    _
  $region29: #{encoder_forward.3} parent=0 // pred_fallthru
    _
  // Predicated region
  $region30: #{encoder_forward.3} parent=0 // pred_check
    _
  $region31: #{encoder_forward.3} parent=0 // pred_check_branch
    %33 = sbr.rel (0) target = $region33
  $region32: #{encoder_forward.3} parent=0 // pred_region
    _
  $region33: #{encoder_forward.3} parent=0 // pred_fallthru
    _
  // Predicated region
  $region34: #{encoder_forward.3} parent=0 // pred_check
    _
  $region35: #{encoder_forward.3} parent=0 // pred_check_branch
    %35 = sbr.rel (0) target = $region37
  $region36: #{encoder_forward.3} parent=0 // pred_region
    _
  $region37: #{encoder_forward.3} parent=0 // pred_fallthru
    _
  // Predicated region
  $region38: #{encoder_forward.3} parent=0 // pred_check
    _
  $region39: #{encoder_forward.3} parent=0 // pred_check_branch
    %37 = sbr.rel (0) target = $region41
  $region40: #{encoder_forward.3} parent=0 // pred_region
    _
  $region41: #{encoder_forward.3} parent=0 // pred_fallthru
    _
  %v39 = vld [vmem:[%s0] sm:$0xf]
  %v40 = vld [vmem:[%s3] sm:$0xf]
  %v41 = vld [vmem:[%s3 + $0x4] sm:$0xf]
  %v42 = vld [vmem:[%s3 + $0x8] sm:$0xf]
  %v43 = vld [vmem:[%s3 + $0xc] sm:$0xf]
  %v44 = vld [vmem:[%s3 + $0x10] sm:$0xf]
  %v45 = vld [vmem:[%s3 + $0x14] sm:$0xf]
  %v46 = vld [vmem:[%s3 + $0x18] sm:$0xf]
  %v47 = vld [vmem:[%s3 + $0x1c] sm:$0xf]
  %v48 = vld [vmem:[%s3 + $0x20] sm:$0xf]
  %v49 = vld [vmem:[%s3 + $0x24] sm:$0xf]
  %v50 = vld [vmem:[%s1] sm:$0xf]
  %s51 = scalar_lea.vmem %s3, 40
  %v52 = vld [vmem:[%s51] sm:$0xf]
  %v53 = vld [vmem:[%s51 + $0x4] sm:$0xf]
  %v54 = vld [vmem:[%s51 + $0x8] sm:$0xf]
  %v55 = vld [vmem:[%s51 + $0xc] sm:$0xf]
  %v56 = vld [vmem:[%s51 + $0x10] sm:$0xf]
  %v57 = vld [vmem:[%s51 + $0x14] sm:$0xf]
  %v58 = vld [vmem:[%s51 + $0x18] sm:$0xf]
  %v59 = vld [vmem:[%s51 + $0x1c] sm:$0xf]
  %v60 = vld [vmem:[%s51 + $0x20] sm:$0xf]
  %v61 = vld [vmem:[%s51 + $0x24] sm:$0xf]
  %v72 = vunpack.c.l.b16 %v52
  %v73 = vunpack.c.l.b16 %v53
  %v74 = vunpack.c.l.b16 %v54
  %v75 = vunpack.c.l.b16 %v55
  %v76 = vunpack.c.l.b16 %v56
  %v77 = vunpack.c.l.b16 %v57
  %v78 = vunpack.c.l.b16 %v58
  %v79 = vunpack.c.l.b16 %v59
  %v80 = vunpack.c.l.b16 %v60
  %v81 = vunpack.c.l.b16 %v61
  %v82 = vpack.c.b16 %v73, %v72
  %v83 = vpack.c.b16 %v75, %v74
  %v84 = vpack.c.b16 %v77, %v76
  %v85 = vpack.c.b16 %v79, %v78
  %v86 = vpack.c.b16 %v81, %v80
  %vm92 = vcmask 654336
  %v94 = vsel %vm92, %v50, 0
  %96 = vmatprep.subr.bf16.mxu0 0
  %97 = vmatpush1.bf16.msra.mxu0 0
  %98 = vmatprep.subr.bf16.mxu0 0
  %99 = vmatpush1.bf16.msra.mxu0 0
  %100 = vmatprep.subr.bf16.mxu0 0
  %101 = vmatpush1.bf16.msra.mxu0 0
  %102 = vmatprep.subr.bf16.mxu0 0
  %103 = vmatpush1.bf16.msra.mxu0 %v86
  %104 = vmatprep.subr.bf16.mxu0 0
  %105 = vmatpush1.bf16.msra.mxu0 %v85
  %106 = vmatprep.subr.bf16.mxu0 0
  %107 = vmatpush1.bf16.msra.mxu0 %v84
  %108 = vmatprep.subr.bf16.mxu0 0
  %109 = vmatpush1.bf16.msra.mxu0 %v83
  %110 = vmatprep.subr.bf16.mxu0 0
  %111 = vmatpush1.bf16.msra.mxu0 %v82
  %112 = vmatprep.subr.bf16.mxu0 0
  %113 = vmatpush2.bf16.msra.mxu0 0
  %114 = vmatprep.subr.bf16.mxu0 0
  %115 = vmatpush2.bf16.msra.mxu0 0
  %116 = vmatprep.subr.bf16.mxu0 0
  %117 = vmatpush2.bf16.msra.mxu0 0
  %118 = vmatprep.subr.bf16.mxu0 0
  %119 = vmatpush2.bf16.msra.mxu0 0
  %120 = vmatprep.subr.bf16.mxu0 0
  %121 = vmatpush2.bf16.msra.mxu0 0
  %122 = vmatprep.subr.bf16.mxu0 0
  %123 = vmatpush2.bf16.msra.mxu0 0
  %124 = vmatprep.subr.bf16.mxu0 0
  %125 = vmatpush2.bf16.msra.mxu0 0
  %126 = vmatprep.subr.bf16.mxu0 0
  %127 = vmatpush2.bf16.msra.mxu0 0
  %128 = vmatprep.mubr.bf16.mxu0 0
  %129 = vmatmul.mubr.bf16.gmra.mxu0 %v94
  %v130 = vpop.f32.mrf.mxu0
  %v131 = vadd.f32 0.0, %v130
  %v132 = vpop.f32.mrf.mxu0
  %v133 = vpop.f32.mrf.mxu0
  %v134 = vpop.f32.mrf.mxu0
  %135 = vdwg.mxu0
  %v146 = vunpack.c.l.b16 %v40
  %v147 = vunpack.c.l.b16 %v41
  %v148 = vunpack.c.l.b16 %v42
  %v149 = vunpack.c.l.b16 %v43
  %v150 = vunpack.c.l.b16 %v44
  %v151 = vunpack.c.l.b16 %v45
  %v152 = vunpack.c.l.b16 %v46
  %v153 = vunpack.c.l.b16 %v47
  %v154 = vunpack.c.l.b16 %v48
  %v155 = vunpack.c.l.b16 %v49
  %v156 = vpack.c.b16 %v147, %v146
  %v157 = vpack.c.b16 %v149, %v148
  %v158 = vpack.c.b16 %v151, %v150
  %v159 = vpack.c.b16 %v153, %v152
  %v160 = vpack.c.b16 %v155, %v154
  %v167 = vsel %vm92, %v39, 0
  %169 = vmatprep.subr.bf16.mxu0 0
  %170 = vmatpush1.bf16.msra.mxu0 0
  %171 = vmatprep.subr.bf16.mxu0 0
  %172 = vmatpush1.bf16.msra.mxu0 0
  %173 = vmatprep.subr.bf16.mxu0 0
  %174 = vmatpush1.bf16.msra.mxu0 0
  %175 = vmatprep.subr.bf16.mxu0 0
  %176 = vmatpush1.bf16.msra.mxu0 %v160
  %177 = vmatprep.subr.bf16.mxu0 0
  %178 = vmatpush1.bf16.msra.mxu0 %v159
  %179 = vmatprep.subr.bf16.mxu0 0
  %180 = vmatpush1.bf16.msra.mxu0 %v158
  %181 = vmatprep.subr.bf16.mxu0 0
  %182 = vmatpush1.bf16.msra.mxu0 %v157
  %183 = vmatprep.subr.bf16.mxu0 0
  %184 = vmatpush1.bf16.msra.mxu0 %v156
  %185 = vmatprep.subr.bf16.mxu0 0
  %186 = vmatpush2.bf16.msra.mxu0 0
  %187 = vmatprep.subr.bf16.mxu0 0
  %188 = vmatpush2.bf16.msra.mxu0 0
  %189 = vmatprep.subr.bf16.mxu0 0
  %190 = vmatpush2.bf16.msra.mxu0 0
  %191 = vmatprep.subr.bf16.mxu0 0
  %192 = vmatpush2.bf16.msra.mxu0 0
  %193 = vmatprep.subr.bf16.mxu0 0
  %194 = vmatpush2.bf16.msra.mxu0 0
  %195 = vmatprep.subr.bf16.mxu0 0
  %196 = vmatpush2.bf16.msra.mxu0 0
  %197 = vmatprep.subr.bf16.mxu0 0
  %198 = vmatpush2.bf16.msra.mxu0 0
  %199 = vmatprep.subr.bf16.mxu0 0
  %200 = vmatpush2.bf16.msra.mxu0 0
  %201 = vmatprep.mubr.bf16.mxu0 0
  %202 = vmatmul.mubr.bf16.gmra.mxu0 %v167
  %v203 = vpop.f32.mrf.mxu0
  %v204 = vadd.f32 %v131, %v203
  %v205 = vpop.f32.mrf.mxu0
  %v206 = vpop.f32.mrf.mxu0
  %v207 = vpop.f32.mrf.mxu0
  %208 = vdwg.mxu0
  %v209 = vld [vmem:[%s2] sm:$0xf]
  %s210 = scalar_lea.vmem %s3, 80
  %v211 = vld [vmem:[%s210] sm:$0xf]
  %v212 = vld [vmem:[%s210 + $0x4] sm:$0xf]
  %v213 = vld [vmem:[%s210 + $0x8] sm:$0xf]
  %v214 = vld [vmem:[%s210 + $0xc] sm:$0xf]
  %v215 = vld [vmem:[%s210 + $0x10] sm:$0xf]
  %v216 = vld [vmem:[%s210 + $0x14] sm:$0xf]
  %v217 = vld [vmem:[%s210 + $0x18] sm:$0xf]
  %v218 = vld [vmem:[%s210 + $0x1c] sm:$0xf]
  %v219 = vld [vmem:[%s210 + $0x20] sm:$0xf]
  %v220 = vld [vmem:[%s210 + $0x24] sm:$0xf]
  %v231 = vunpack.c.l.b16 %v211
  %v232 = vunpack.c.l.b16 %v212
  %v233 = vunpack.c.l.b16 %v213
  %v234 = vunpack.c.l.b16 %v214
  %v235 = vunpack.c.l.b16 %v215
  %v236 = vunpack.c.l.b16 %v216
  %v237 = vunpack.c.l.b16 %v217
  %v238 = vunpack.c.l.b16 %v218
  %v239 = vunpack.c.l.b16 %v219
  %v240 = vunpack.c.l.b16 %v220
  %v241 = vpack.c.b16 %v232, %v231
  %v242 = vpack.c.b16 %v234, %v233
  %v243 = vpack.c.b16 %v236, %v235
  %v244 = vpack.c.b16 %v238, %v237
  %v245 = vpack.c.b16 %v240, %v239
  %v252 = vsel %vm92, %v209, 0
  %254 = vmatprep.subr.bf16.mxu0 0
  %255 = vmatpush1.bf16.msra.mxu0 0
  %256 = vmatprep.subr.bf16.mxu0 0
  %257 = vmatpush1.bf16.msra.mxu0 0
  %258 = vmatprep.subr.bf16.mxu0 0
  %259 = vmatpush1.bf16.msra.mxu0 0
  %260 = vmatprep.subr.bf16.mxu0 0
  %261 = vmatpush1.bf16.msra.mxu0 %v245
  %262 = vmatprep.subr.bf16.mxu0 0
  %263 = vmatpush1.bf16.msra.mxu0 %v244
  %264 = vmatprep.subr.bf16.mxu0 0
  %265 = vmatpush1.bf16.msra.mxu0 %v243
  %266 = vmatprep.subr.bf16.mxu0 0
  %267 = vmatpush1.bf16.msra.mxu0 %v242
  %268 = vmatprep.subr.bf16.mxu0 0
  %269 = vmatpush1.bf16.msra.mxu0 %v241
  %270 = vmatprep.subr.bf16.mxu0 0
  %271 = vmatpush2.bf16.msra.mxu0 0
  %272 = vmatprep.subr.bf16.mxu0 0
  %273 = vmatpush2.bf16.msra.mxu0 0
  %274 = vmatprep.subr.bf16.mxu0 0
  %275 = vmatpush2.bf16.msra.mxu0 0
  %276 = vmatprep.subr.bf16.mxu0 0
  %277 = vmatpush2.bf16.msra.mxu0 0
  %278 = vmatprep.subr.bf16.mxu0 0
  %279 = vmatpush2.bf16.msra.mxu0 0
  %280 = vmatprep.subr.bf16.mxu0 0
  %281 = vmatpush2.bf16.msra.mxu0 0
  %282 = vmatprep.subr.bf16.mxu0 0
  %283 = vmatpush2.bf16.msra.mxu0 0
  %284 = vmatprep.subr.bf16.mxu0 0
  %285 = vmatpush2.bf16.msra.mxu0 0
  %286 = vmatprep.mubr.bf16.mxu0 0
  %287 = vmatmul.mubr.bf16.gmra.mxu0 %v252
  %v288 = vpop.f32.mrf.mxu0
  %v289 = vadd.f32 0.0, %v288
  %v290 = vpop.f32.mrf.mxu0
  %v291 = vpop.f32.mrf.mxu0
  %v292 = vpop.f32.mrf.mxu0
  %293 = vdwg.mxu0
  %v294 = vadd.f32 %v204, %v289
  %v295 = vld [vmem:[%s4] sm:$0x1]
  %v297 = vlaneseq
  %v298 = vshrl.u32 %v297, 7
  %v299 = vsub.s32 0, %v298
  %v300 = vrot.slane %v295, %v299
  %v302 = vadd.f32 %v294, %v300
  %vm303 = vcmask 523264
  %v304 = vsel %vm303, %v302, 0.0
  %v305 = vrot.slane %v304, 4
  %v306 = vadd.f32 %v304, %v305
  %v307 = vrot.slane %v306, 2
  %v308 = vadd.f32 %v306, %v307
  %v309 = vrot.slane %v308, 1
  %v310 = vadd.f32 %v308, %v309
  %v311 = vrcp.pop 8.0
  %v312 = vmul.f32 %v310, %v311
  %v313 = vld [vmem:[%s5] sm:$0xff]
  %v314 = vld [vmem:[%s5 + $0x8] sm:$0xff]
  %v315 = vld [vmem:[%s5 + $0x10] sm:$0xff]
  %v316 = vld [vmem:[%s5 + $0x18] sm:$0xff]
  %v317 = vld [vmem:[%s5 + $0x20] sm:$0xff]
  %v318 = vld [vmem:[%s5 + $0x28] sm:$0xff]
  %v319 = vld [vmem:[%s5 + $0x30] sm:$0xff]
  %v320 = vld [vmem:[%s5 + $0x38] sm:$0xff]
  %v322 = vsel %vm303, %v312, 0
  %324 = vmatprep.subr.mxu0 0.0
  %325 = vmatpush1.msra.mxu0 0.0
  %326 = vmatprep.subr.mxu0 0.0
  %327 = vmatpush1.msra.mxu0 0.0
  %328 = vmatprep.subr.mxu0 0.0
  %329 = vmatpush1.msra.mxu0 0.0
  %330 = vmatprep.subr.mxu0 0.0
  %331 = vmatpush1.msra.mxu0 0.0
  %332 = vmatprep.subr.mxu0 0.0
  %333 = vmatpush1.msra.mxu0 0.0
  %334 = vmatprep.subr.mxu0 0.0
  %335 = vmatpush1.msra.mxu0 0.0
  %336 = vmatprep.subr.mxu0 0.0
  %337 = vmatpush1.msra.mxu0 0.0
  %338 = vmatprep.subr.mxu0 0.0
  %339 = vmatpush1.msra.mxu0 0.0
  %340 = vmatprep.subr.mxu0 0.0
  %341 = vmatpush1.msra.mxu0 %v320
  %342 = vmatprep.subr.mxu0 0.0
  %343 = vmatpush1.msra.mxu0 %v319
  %344 = vmatprep.subr.mxu0 0.0
  %345 = vmatpush1.msra.mxu0 %v318
  %346 = vmatprep.subr.mxu0 0.0
  %347 = vmatpush1.msra.mxu0 %v317
  %348 = vmatprep.subr.mxu0 0.0
  %349 = vmatpush1.msra.mxu0 %v316
  %350 = vmatprep.subr.mxu0 0.0
  %351 = vmatpush1.msra.mxu0 %v315
  %352 = vmatprep.subr.mxu0 0.0
  %353 = vmatpush1.msra.mxu0 %v314
  %354 = vmatprep.subr.mxu0 0.0
  %355 = vmatpush1.msra.mxu0 %v313
  %356 = vmatprep.subr.mxu0 0.0
  %357 = vmatpush2.msra.mxu0 0.0
  %358 = vmatprep.subr.mxu0 0.0
  %359 = vmatpush2.msra.mxu0 0.0
  %360 = vmatprep.subr.mxu0 0.0
  %361 = vmatpush2.msra.mxu0 0.0
  %362 = vmatprep.subr.mxu0 0.0
  %363 = vmatpush2.msra.mxu0 0.0
  %364 = vmatprep.subr.mxu0 0.0
  %365 = vmatpush2.msra.mxu0 0.0
  %366 = vmatprep.subr.mxu0 0.0
  %367 = vmatpush2.msra.mxu0 0.0
  %368 = vmatprep.subr.mxu0 0.0
  %369 = vmatpush2.msra.mxu0 0.0
  %370 = vmatprep.subr.mxu0 0.0
  %371 = vmatpush2.msra.mxu0 0.0
  %372 = vmatprep.subr.mxu0 0.0
  %373 = vmatpush2.msra.mxu0 0.0
  %374 = vmatprep.subr.mxu0 0.0
  %375 = vmatpush2.msra.mxu0 0.0
  %376 = vmatprep.subr.mxu0 0.0
  %377 = vmatpush2.msra.mxu0 0.0
  %378 = vmatprep.subr.mxu0 0.0
  %379 = vmatpush2.msra.mxu0 0.0
  %380 = vmatprep.subr.mxu0 0.0
  %381 = vmatpush2.msra.mxu0 0.0
  %382 = vmatprep.subr.mxu0 0.0
  %383 = vmatpush2.msra.mxu0 0.0
  %384 = vmatprep.subr.mxu0 0.0
  %385 = vmatpush2.msra.mxu0 0.0
  %386 = vmatprep.subr.mxu0 0.0
  %387 = vmatpush2.msra.mxu0 0.0
  %388 = vmatprep.mubr.f32.mxu0 0.0
  %389 = vmatmul.mubr.f32.gmra.mxu0 %v322
  %v390 = vpop.f32.mrf.mxu0
  %v391 = vadd.f32 0.0, %v390
  %v392 = vpop.f32.mrf.mxu0
  %393 = vdwg.mxu0
  %v394 = vld [vmem:[%s6] sm:$0xff]
  %v395 = vld [vmem:[%s6 + $0x8] sm:$0xff]
  %vm396 = vcmask 130048
  %v398 = vsel %vm396, %v391, 0
  %400 = vmatprep.subr.mxu0 0.0
  %401 = vmatpush1.msra.mxu0 0.0
  %402 = vmatprep.subr.mxu0 0.0
  %403 = vmatpush1.msra.mxu0 0.0
  %404 = vmatprep.subr.mxu0 0.0
  %405 = vmatpush1.msra.mxu0 0.0
  %406 = vmatprep.subr.mxu0 0.0
  %407 = vmatpush1.msra.mxu0 0.0
  %408 = vmatprep.subr.mxu0 0.0
  %409 = vmatpush1.msra.mxu0 0.0
  %410 = vmatprep.subr.mxu0 0.0
  %411 = vmatpush1.msra.mxu0 0.0
  %412 = vmatprep.subr.mxu0 0.0
  %413 = vmatpush1.msra.mxu0 0.0
  %414 = vmatprep.subr.mxu0 0.0
  %415 = vmatpush1.msra.mxu0 0.0
  %416 = vmatprep.subr.mxu0 0.0
  %417 = vmatpush1.msra.mxu0 0.0
  %418 = vmatprep.subr.mxu0 0.0
  %419 = vmatpush1.msra.mxu0 0.0
  %420 = vmatprep.subr.mxu0 0.0
  %421 = vmatpush1.msra.mxu0 0.0
  %422 = vmatprep.subr.mxu0 0.0
  %423 = vmatpush1.msra.mxu0 0.0
  %424 = vmatprep.subr.mxu0 0.0
  %425 = vmatpush1.msra.mxu0 0.0
  %426 = vmatprep.subr.mxu0 0.0
  %427 = vmatpush1.msra.mxu0 0.0
  %428 = vmatprep.subr.mxu0 0.0
  %429 = vmatpush1.msra.mxu0 %v395
  %430 = vmatprep.subr.mxu0 0.0
  %431 = vmatpush1.msra.mxu0 %v394
  %432 = vmatprep.subr.mxu0 0.0
  %433 = vmatpush2.msra.mxu0 0.0
  %434 = vmatprep.subr.mxu0 0.0
  %435 = vmatpush2.msra.mxu0 0.0
  %436 = vmatprep.subr.mxu0 0.0
  %437 = vmatpush2.msra.mxu0 0.0
  %438 = vmatprep.subr.mxu0 0.0
  %439 = vmatpush2.msra.mxu0 0.0
  %440 = vmatprep.subr.mxu0 0.0
  %441 = vmatpush2.msra.mxu0 0.0
  %442 = vmatprep.subr.mxu0 0.0
  %443 = vmatpush2.msra.mxu0 0.0
  %444 = vmatprep.subr.mxu0 0.0
  %445 = vmatpush2.msra.mxu0 0.0
  %446 = vmatprep.subr.mxu0 0.0
  %447 = vmatpush2.msra.mxu0 0.0
  %448 = vmatprep.subr.mxu0 0.0
  %449 = vmatpush2.msra.mxu0 0.0
  %450 = vmatprep.subr.mxu0 0.0
  %451 = vmatpush2.msra.mxu0 0.0
  %452 = vmatprep.subr.mxu0 0.0
  %453 = vmatpush2.msra.mxu0 0.0
  %454 = vmatprep.subr.mxu0 0.0
  %455 = vmatpush2.msra.mxu0 0.0
  %456 = vmatprep.subr.mxu0 0.0
  %457 = vmatpush2.msra.mxu0 0.0
  %458 = vmatprep.subr.mxu0 0.0
  %459 = vmatpush2.msra.mxu0 0.0
  %460 = vmatprep.subr.mxu0 0.0
  %461 = vmatpush2.msra.mxu0 0.0
  %462 = vmatprep.subr.mxu0 0.0
  %463 = vmatpush2.msra.mxu0 0.0
  %464 = vmatprep.mubr.f32.mxu0 0.0
  %465 = vmatmul.mubr.f32.gmra.mxu0 %v398
  %v466 = vpop.f32.mrf.mxu0
  %v467 = vadd.f32 0.0, %v466
  %v468 = vpop.f32.mrf.mxu0
  %469 = vdwg.mxu0
  %v470 = vlaneseq
  %v471 = vshrl.u32 %v470, 7
  %v472 = vsub.s32 0, %v471
  %v473 = vrot.slane %v467, %v472
  %v474 = vsub.f32 %v302, %v473
  %v475 = vmul.f32 %v474, %v474
  %v476 = vsel %vm303, %v475, 0.0
  %v477 = vrot.slane %v476, 4
  %v478 = vadd.f32 %v476, %v477
  %v479 = vrot.slane %v478, 2
  %v480 = vadd.f32 %v478, %v479
  %v481 = vrot.slane %v480, 1
  %v482 = vadd.f32 %v480, %v481
  %v483 = vmul.f32 %v482, %v311
  %v485 = vsel %vm303, %v483, 0
  %487 = vmatprep.subr.mxu0 0.0
  %488 = vmatpush1.msra.mxu0 0.0
  %489 = vmatprep.subr.mxu0 0.0
  %490 = vmatpush1.msra.mxu0 0.0
  %491 = vmatprep.subr.mxu0 0.0
  %492 = vmatpush1.msra.mxu0 0.0
  %493 = vmatprep.subr.mxu0 0.0
  %494 = vmatpush1.msra.mxu0 0.0
  %495 = vmatprep.subr.mxu0 0.0
  %496 = vmatpush1.msra.mxu0 0.0
  %497 = vmatprep.subr.mxu0 0.0
  %498 = vmatpush1.msra.mxu0 0.0
  %499 = vmatprep.subr.mxu0 0.0
  %500 = vmatpush1.msra.mxu0 0.0
  %501 = vmatprep.subr.mxu0 0.0
  %502 = vmatpush1.msra.mxu0 0.0
  %503 = vmatprep.subr.mxu0 0.0
  %504 = vmatpush1.msra.mxu0 %v320
  %505 = vmatprep.subr.mxu0 0.0
  %506 = vmatpush1.msra.mxu0 %v319
  %507 = vmatprep.subr.mxu0 0.0
  %508 = vmatpush1.msra.mxu0 %v318
  %509 = vmatprep.subr.mxu0 0.0
  %510 = vmatpush1.msra.mxu0 %v317
  %511 = vmatprep.subr.mxu0 0.0
  %512 = vmatpush1.msra.mxu0 %v316
  %513 = vmatprep.subr.mxu0 0.0
  %514 = vmatpush1.msra.mxu0 %v315
  %515 = vmatprep.subr.mxu0 0.0
  %516 = vmatpush1.msra.mxu0 %v314
  %517 = vmatprep.subr.mxu0 0.0
  %518 = vmatpush1.msra.mxu0 %v313
  %519 = vmatprep.subr.mxu0 0.0
  %520 = vmatpush2.msra.mxu0 0.0
  %521 = vmatprep.subr.mxu0 0.0
  %522 = vmatpush2.msra.mxu0 0.0
  %523 = vmatprep.subr.mxu0 0.0
  %524 = vmatpush2.msra.mxu0 0.0
  %525 = vmatprep.subr.mxu0 0.0
  %526 = vmatpush2.msra.mxu0 0.0
  %527 = vmatprep.subr.mxu0 0.0
  %528 = vmatpush2.msra.mxu0 0.0
  %529 = vmatprep.subr.mxu0 0.0
  %530 = vmatpush2.msra.mxu0 0.0
  %531 = vmatprep.subr.mxu0 0.0
  %532 = vmatpush2.msra.mxu0 0.0
  %533 = vmatprep.subr.mxu0 0.0
  %534 = vmatpush2.msra.mxu0 0.0
  %535 = vmatprep.subr.mxu0 0.0
  %536 = vmatpush2.msra.mxu0 0.0
  %537 = vmatprep.subr.mxu0 0.0
  %538 = vmatpush2.msra.mxu0 0.0
  %539 = vmatprep.subr.mxu0 0.0
  %540 = vmatpush2.msra.mxu0 0.0
  %541 = vmatprep.subr.mxu0 0.0
  %542 = vmatpush2.msra.mxu0 0.0
  %543 = vmatprep.subr.mxu0 0.0
  %544 = vmatpush2.msra.mxu0 0.0
  %545 = vmatprep.subr.mxu0 0.0
  %546 = vmatpush2.msra.mxu0 0.0
  %547 = vmatprep.subr.mxu0 0.0
  %548 = vmatpush2.msra.mxu0 0.0
  %549 = vmatprep.subr.mxu0 0.0
  %550 = vmatpush2.msra.mxu0 0.0
  %551 = vmatprep.mubr.f32.mxu0 0.0
  %552 = vmatmul.mubr.f32.gmra.mxu0 %v485
  %v553 = vpop.f32.mrf.mxu0
  %v554 = vadd.f32 0.0, %v553
  %v555 = vpop.f32.mrf.mxu0
  %556 = vdwg.mxu0
  %v558 = vsel %vm396, %v554, 0
  %560 = vmatprep.subr.mxu0 0.0
  %561 = vmatpush1.msra.mxu0 0.0
  %562 = vmatprep.subr.mxu0 0.0
  %563 = vmatpush1.msra.mxu0 0.0
  %564 = vmatprep.subr.mxu0 0.0
  %565 = vmatpush1.msra.mxu0 0.0
  %566 = vmatprep.subr.mxu0 0.0
  %567 = vmatpush1.msra.mxu0 0.0
  %568 = vmatprep.subr.mxu0 0.0
  %569 = vmatpush1.msra.mxu0 0.0
  %570 = vmatprep.subr.mxu0 0.0
  %571 = vmatpush1.msra.mxu0 0.0
  %572 = vmatprep.subr.mxu0 0.0
  %573 = vmatpush1.msra.mxu0 0.0
  %574 = vmatprep.subr.mxu0 0.0
  %575 = vmatpush1.msra.mxu0 0.0
  %576 = vmatprep.subr.mxu0 0.0
  %577 = vmatpush1.msra.mxu0 0.0
  %578 = vmatprep.subr.mxu0 0.0
  %579 = vmatpush1.msra.mxu0 0.0
  %580 = vmatprep.subr.mxu0 0.0
  %581 = vmatpush1.msra.mxu0 0.0
  %582 = vmatprep.subr.mxu0 0.0
  %583 = vmatpush1.msra.mxu0 0.0
  %584 = vmatprep.subr.mxu0 0.0
  %585 = vmatpush1.msra.mxu0 0.0
  %586 = vmatprep.subr.mxu0 0.0
  %587 = vmatpush1.msra.mxu0 0.0
  %588 = vmatprep.subr.mxu0 0.0
  %589 = vmatpush1.msra.mxu0 %v395
  %590 = vmatprep.subr.mxu0 0.0
  %591 = vmatpush1.msra.mxu0 %v394
  %592 = vmatprep.subr.mxu0 0.0
  %593 = vmatpush2.msra.mxu0 0.0
  %594 = vmatprep.subr.mxu0 0.0
  %595 = vmatpush2.msra.mxu0 0.0
  %596 = vmatprep.subr.mxu0 0.0
  %597 = vmatpush2.msra.mxu0 0.0
  %598 = vmatprep.subr.mxu0 0.0
  %599 = vmatpush2.msra.mxu0 0.0
  %600 = vmatprep.subr.mxu0 0.0
  %601 = vmatpush2.msra.mxu0 0.0
  %602 = vmatprep.subr.mxu0 0.0
  %603 = vmatpush2.msra.mxu0 0.0
  %604 = vmatprep.subr.mxu0 0.0
  %605 = vmatpush2.msra.mxu0 0.0
  %606 = vmatprep.subr.mxu0 0.0
  %607 = vmatpush2.msra.mxu0 0.0
  %608 = vmatprep.subr.mxu0 0.0
  %609 = vmatpush2.msra.mxu0 0.0
  %610 = vmatprep.subr.mxu0 0.0
  %611 = vmatpush2.msra.mxu0 0.0
  %612 = vmatprep.subr.mxu0 0.0
  %613 = vmatpush2.msra.mxu0 0.0
  %614 = vmatprep.subr.mxu0 0.0
  %615 = vmatpush2.msra.mxu0 0.0
  %616 = vmatprep.subr.mxu0 0.0
  %617 = vmatpush2.msra.mxu0 0.0
  %618 = vmatprep.subr.mxu0 0.0
  %619 = vmatpush2.msra.mxu0 0.0
  %620 = vmatprep.subr.mxu0 0.0
  %621 = vmatpush2.msra.mxu0 0.0
  %622 = vmatprep.subr.mxu0 0.0
  %623 = vmatpush2.msra.mxu0 0.0
  %624 = vmatprep.mubr.f32.mxu0 0.0
  %625 = vmatmul.mubr.f32.gmra.mxu0 %v558
  %v626 = vpop.f32.mrf.mxu0
  %v627 = vadd.f32 1e-05, %v626
  %v628 = vpop.f32.mrf.mxu0
  %629 = vdwg.mxu0
  %v630 = vrsqrt.pop %v627
  %v631 = vlaneseq
  %v632 = vshrl.u32 %v631, 7
  %v633 = vsub.s32 0, %v632
  %v634 = vrot.slane %v630, %v633
  %v635 = vmul.f32 %v474, %v634
  %s636 = sld [smem:[#allocation2]]
  %vm637 = vcmp.gt.f32.partialorder %v635, 0.0
  %v638 = vstv %s636
  %v639 = vmul.f32 %v638, %v635
  %v640 = vsel %vm637, %v635, %v639
  %v641 = vpack.c.bf16 %v640, %v640
  %vm642 = vcmask 519168
  %643 = vst.msk [vmem:[%s10] sm:$0xf] %vm642, %v641
  %v644 = vld [vmem:[%s10] sm:$0x1]
  %v645 = vld [vmem:[%s7] sm:$0xf]
  %v646 = vld [vmem:[%s7 + $0x4] sm:$0xf]
  %v647 = vld [vmem:[%s7 + $0x8] sm:$0xf]
  %v648 = vld [vmem:[%s7 + $0xc] sm:$0xf]
  %v649 = vld [vmem:[%s7 + $0x10] sm:$0xf]
  %v650 = vld [vmem:[%s7 + $0x14] sm:$0xf]
  %v651 = vld [vmem:[%s7 + $0x18] sm:$0xf]
  %v652 = vld [vmem:[%s7 + $0x1c] sm:$0xf]
  %v653 = vld [vmem:[%s10] sm:$0x2]
  %v654 = vld [vmem:[%s7 + $0x20] sm:$0xf]
  %v655 = vld [vmem:[%s7 + $0x24] sm:$0xf]
  %v656 = vld [vmem:[%s7 + $0x28] sm:$0xf]
  %v657 = vld [vmem:[%s7 + $0x2c] sm:$0xf]
  %v658 = vld [vmem:[%s7 + $0x30] sm:$0xf]
  %v659 = vld [vmem:[%s7 + $0x34] sm:$0xf]
  %v660 = vld [vmem:[%s7 + $0x38] sm:$0xf]
  %v661 = vld [vmem:[%s7 + $0x3c] sm:$0xf]
  %v663 = vunpack.c.l.b16 %v653
  %v664 = vpack.c.b16 %v663, %v663
  %v665 = vrot.slane %v664, 1
  %v674 = vunpack.c.l.b16 %v654
  %v675 = vunpack.c.l.b16 %v655
  %v676 = vunpack.c.l.b16 %v656
  %v677 = vunpack.c.l.b16 %v657
  %v678 = vunpack.c.l.b16 %v658
  %v679 = vunpack.c.l.b16 %v659
  %v680 = vunpack.c.l.b16 %v660
  %v681 = vunpack.c.l.b16 %v661
  %v682 = vpack.c.b16 %v675, %v674
  %v683 = vpack.c.b16 %v677, %v676
  %v684 = vpack.c.b16 %v679, %v678
  %v685 = vpack.c.b16 %v681, %v680
  %v691 = vsel %vm303, %v665, 0
  %693 = vmatprep.subr.bf16.mxu0 0
  %694 = vmatpush1.bf16.msra.mxu0 0
  %695 = vmatprep.subr.bf16.mxu0 0
  %696 = vmatpush1.bf16.msra.mxu0 0
  %697 = vmatprep.subr.bf16.mxu0 0
  %698 = vmatpush1.bf16.msra.mxu0 0
  %699 = vmatprep.subr.bf16.mxu0 0
  %700 = vmatpush1.bf16.msra.mxu0 0
  %701 = vmatprep.subr.bf16.mxu0 0
  %702 = vmatpush1.bf16.msra.mxu0 %v685
  %703 = vmatprep.subr.bf16.mxu0 0
  %704 = vmatpush1.bf16.msra.mxu0 %v684
  %705 = vmatprep.subr.bf16.mxu0 0
  %706 = vmatpush1.bf16.msra.mxu0 %v683
  %707 = vmatprep.subr.bf16.mxu0 0
  %708 = vmatpush1.bf16.msra.mxu0 %v682
  %709 = vmatprep.subr.bf16.mxu0 0
  %710 = vmatpush2.bf16.msra.mxu0 0
  %711 = vmatprep.subr.bf16.mxu0 0
  %712 = vmatpush2.bf16.msra.mxu0 0
  %713 = vmatprep.subr.bf16.mxu0 0
  %714 = vmatpush2.bf16.msra.mxu0 0
  %715 = vmatprep.subr.bf16.mxu0 0
  %716 = vmatpush2.bf16.msra.mxu0 0
  %717 = vmatprep.subr.bf16.mxu0 0
  %718 = vmatpush2.bf16.msra.mxu0 0
  %719 = vmatprep.subr.bf16.mxu0 0
  %720 = vmatpush2.bf16.msra.mxu0 0
  %721 = vmatprep.subr.bf16.mxu0 0
  %722 = vmatpush2.bf16.msra.mxu0 0
  %723 = vmatprep.subr.bf16.mxu0 0
  %724 = vmatpush2.bf16.msra.mxu0 0
  %725 = vmatprep.mubr.bf16.mxu0 0
  %726 = vmatmul.mubr.bf16.gmra.mxu0 %v691
  %v727 = vpop.f32.mrf.mxu0
  %v728 = vadd.f32 0.0, %v727
  %v729 = vpop.f32.mrf.mxu0
  %v730 = vpop.f32.mrf.mxu0
  %v731 = vpop.f32.mrf.mxu0
  %732 = vdwg.mxu0
  %v741 = vunpack.c.l.b16 %v645
  %v742 = vunpack.c.l.b16 %v646
  %v743 = vunpack.c.l.b16 %v647
  %v744 = vunpack.c.l.b16 %v648
  %v745 = vunpack.c.l.b16 %v649
  %v746 = vunpack.c.l.b16 %v650
  %v747 = vunpack.c.l.b16 %v651
  %v748 = vunpack.c.l.b16 %v652
  %v749 = vpack.c.b16 %v742, %v741
  %v750 = vpack.c.b16 %v744, %v743
  %v751 = vpack.c.b16 %v746, %v745
  %v752 = vpack.c.b16 %v748, %v747
  %v758 = vsel %vm303, %v644, 0
  %760 = vmatprep.subr.bf16.mxu0 0
  %761 = vmatpush1.bf16.msra.mxu0 0
  %762 = vmatprep.subr.bf16.mxu0 0
  %763 = vmatpush1.bf16.msra.mxu0 0
  %764 = vmatprep.subr.bf16.mxu0 0
  %765 = vmatpush1.bf16.msra.mxu0 0
  %766 = vmatprep.subr.bf16.mxu0 0
  %767 = vmatpush1.bf16.msra.mxu0 0
  %768 = vmatprep.subr.bf16.mxu0 0
  %769 = vmatpush1.bf16.msra.mxu0 %v752
  %770 = vmatprep.subr.bf16.mxu0 0
  %771 = vmatpush1.bf16.msra.mxu0 %v751
  %772 = vmatprep.subr.bf16.mxu0 0
  %773 = vmatpush1.bf16.msra.mxu0 %v750
  %774 = vmatprep.subr.bf16.mxu0 0
  %775 = vmatpush1.bf16.msra.mxu0 %v749
  %776 = vmatprep.subr.bf16.mxu0 0
  %777 = vmatpush2.bf16.msra.mxu0 0
  %778 = vmatprep.subr.bf16.mxu0 0
  %779 = vmatpush2.bf16.msra.mxu0 0
  %780 = vmatprep.subr.bf16.mxu0 0
  %781 = vmatpush2.bf16.msra.mxu0 0
  %782 = vmatprep.subr.bf16.mxu0 0
  %783 = vmatpush2.bf16.msra.mxu0 0
  %784 = vmatprep.subr.bf16.mxu0 0
  %785 = vmatpush2.bf16.msra.mxu0 0
  %786 = vmatprep.subr.bf16.mxu0 0
  %787 = vmatpush2.bf16.msra.mxu0 0
  %788 = vmatprep.subr.bf16.mxu0 0
  %789 = vmatpush2.bf16.msra.mxu0 0
  %790 = vmatprep.subr.bf16.mxu0 0
  %791 = vmatpush2.bf16.msra.mxu0 0
  %792 = vmatprep.mubr.bf16.mxu0 0
  %793 = vmatmul.mubr.bf16.gmra.mxu0 %v758
  %v794 = vpop.f32.mrf.mxu0
  %v795 = vadd.f32 %v728, %v794
  %v796 = vpop.f32.mrf.mxu0
  %v797 = vpop.f32.mrf.mxu0
  %v798 = vpop.f32.mrf.mxu0
  %799 = vdwg.mxu0
  %v800 = vld [vmem:[%s10] sm:$0x4]
  %v801 = vld [vmem:[%s7 + $0x40] sm:$0xf]
  %v802 = vld [vmem:[%s7 + $0x44] sm:$0xf]
  %v803 = vld [vmem:[%s7 + $0x48] sm:$0xf]
  %v804 = vld [vmem:[%s7 + $0x4c] sm:$0xf]
  %v805 = vld [vmem:[%s7 + $0x50] sm:$0xf]
  %v806 = vld [vmem:[%s7 + $0x54] sm:$0xf]
  %v807 = vld [vmem:[%s7 + $0x58] sm:$0xf]
  %v808 = vld [vmem:[%s7 + $0x5c] sm:$0xf]
  %v810 = vunpack.c.l.b16 %v800
  %v811 = vpack.c.b16 %v810, %v810
  %v812 = vrot.slane %v811, 2
  %v821 = vunpack.c.l.b16 %v801
  %v822 = vunpack.c.l.b16 %v802
  %v823 = vunpack.c.l.b16 %v803
  %v824 = vunpack.c.l.b16 %v804
  %v825 = vunpack.c.l.b16 %v805
  %v826 = vunpack.c.l.b16 %v806
  %v827 = vunpack.c.l.b16 %v807
  %v828 = vunpack.c.l.b16 %v808
  %v829 = vpack.c.b16 %v822, %v821
  %v830 = vpack.c.b16 %v824, %v823
  %v831 = vpack.c.b16 %v826, %v825
  %v832 = vpack.c.b16 %v828, %v827
  %v838 = vsel %vm303, %v812, 0
  %840 = vmatprep.subr.bf16.mxu0 0
  %841 = vmatpush1.bf16.msra.mxu0 0
  %842 = vmatprep.subr.bf16.mxu0 0
  %843 = vmatpush1.bf16.msra.mxu0 0
  %844 = vmatprep.subr.bf16.mxu0 0
  %845 = vmatpush1.bf16.msra.mxu0 0
  %846 = vmatprep.subr.bf16.mxu0 0
  %847 = vmatpush1.bf16.msra.mxu0 0
  %848 = vmatprep.subr.bf16.mxu0 0
  %849 = vmatpush1.bf16.msra.mxu0 %v832
  %850 = vmatprep.subr.bf16.mxu0 0
  %851 = vmatpush1.bf16.msra.mxu0 %v831
  %852 = vmatprep.subr.bf16.mxu0 0
  %853 = vmatpush1.bf16.msra.mxu0 %v830
  %854 = vmatprep.subr.bf16.mxu0 0
  %855 = vmatpush1.bf16.msra.mxu0 %v829
  %856 = vmatprep.subr.bf16.mxu0 0
  %857 = vmatpush2.bf16.msra.mxu0 0
  %858 = vmatprep.subr.bf16.mxu0 0
  %859 = vmatpush2.bf16.msra.mxu0 0
  %860 = vmatprep.subr.bf16.mxu0 0
  %861 = vmatpush2.bf16.msra.mxu0 0
  %862 = vmatprep.subr.bf16.mxu0 0
  %863 = vmatpush2.bf16.msra.mxu0 0
  %864 = vmatprep.subr.bf16.mxu0 0
  %865 = vmatpush2.bf16.msra.mxu0 0
  %866 = vmatprep.subr.bf16.mxu0 0
  %867 = vmatpush2.bf16.msra.mxu0 0
  %868 = vmatprep.subr.bf16.mxu0 0
  %869 = vmatpush2.bf16.msra.mxu0 0
  %870 = vmatprep.subr.bf16.mxu0 0
  %871 = vmatpush2.bf16.msra.mxu0 0
  %872 = vmatprep.mubr.bf16.mxu0 0
  %873 = vmatmul.mubr.bf16.gmra.mxu0 %v838
  %v874 = vpop.f32.mrf.mxu0
  %v875 = vadd.f32 0.0, %v874
  %v876 = vpop.f32.mrf.mxu0
  %v877 = vpop.f32.mrf.mxu0
  %v878 = vpop.f32.mrf.mxu0
  %879 = vdwg.mxu0
  %v880 = vadd.f32 %v795, %v875
  %v881 = vld [vmem:[%s10] sm:$0x8]
  %v882 = vld [vmem:[%s7 + $0x60] sm:$0xf]
  %v883 = vld [vmem:[%s7 + $0x64] sm:$0xf]
  %v884 = vld [vmem:[%s7 + $0x68] sm:$0xf]
  %v885 = vld [vmem:[%s7 + $0x6c] sm:$0xf]
  %v886 = vld [vmem:[%s7 + $0x70] sm:$0xf]
  %v887 = vld [vmem:[%s7 + $0x74] sm:$0xf]
  %v888 = vld [vmem:[%s7 + $0x78] sm:$0xf]
  %v889 = vld [vmem:[%s7 + $0x7c] sm:$0xf]
  %v891 = vunpack.c.l.b16 %v881
  %v892 = vpack.c.b16 %v891, %v891
  %v893 = vrot.slane %v892, 3
  %v902 = vunpack.c.l.b16 %v882
  %v903 = vunpack.c.l.b16 %v883
  %v904 = vunpack.c.l.b16 %v884
  %v905 = vunpack.c.l.b16 %v885
  %v906 = vunpack.c.l.b16 %v886
  %v907 = vunpack.c.l.b16 %v887
  %v908 = vunpack.c.l.b16 %v888
  %v909 = vunpack.c.l.b16 %v889
  %v910 = vpack.c.b16 %v903, %v902
  %v911 = vpack.c.b16 %v905, %v904
  %v912 = vpack.c.b16 %v907, %v906
  %v913 = vpack.c.b16 %v909, %v908
  %v919 = vsel %vm303, %v893, 0
  %921 = vmatprep.subr.bf16.mxu0 0
  %922 = vmatpush1.bf16.msra.mxu0 0
  %923 = vmatprep.subr.bf16.mxu0 0
  %924 = vmatpush1.bf16.msra.mxu0 0
  %925 = vmatprep.subr.bf16.mxu0 0
  %926 = vmatpush1.bf16.msra.mxu0 0
  %927 = vmatprep.subr.bf16.mxu0 0
  %928 = vmatpush1.bf16.msra.mxu0 0
  %929 = vmatprep.subr.bf16.mxu0 0
  %930 = vmatpush1.bf16.msra.mxu0 %v913
  %931 = vmatprep.subr.bf16.mxu0 0
  %932 = vmatpush1.bf16.msra.mxu0 %v912
  %933 = vmatprep.subr.bf16.mxu0 0
  %934 = vmatpush1.bf16.msra.mxu0 %v911
  %935 = vmatprep.subr.bf16.mxu0 0
  %936 = vmatpush1.bf16.msra.mxu0 %v910
  %937 = vmatprep.subr.bf16.mxu0 0
  %938 = vmatpush2.bf16.msra.mxu0 0
  %939 = vmatprep.subr.bf16.mxu0 0
  %940 = vmatpush2.bf16.msra.mxu0 0
  %941 = vmatprep.subr.bf16.mxu0 0
  %942 = vmatpush2.bf16.msra.mxu0 0
  %943 = vmatprep.subr.bf16.mxu0 0
  %944 = vmatpush2.bf16.msra.mxu0 0
  %945 = vmatprep.subr.bf16.mxu0 0
  %946 = vmatpush2.bf16.msra.mxu0 0
  %947 = vmatprep.subr.bf16.mxu0 0
  %948 = vmatpush2.bf16.msra.mxu0 0
  %949 = vmatprep.subr.bf16.mxu0 0
  %950 = vmatpush2.bf16.msra.mxu0 0
  %951 = vmatprep.subr.bf16.mxu0 0
  %952 = vmatpush2.bf16.msra.mxu0 0
  %953 = vmatprep.mubr.bf16.mxu0 0
  %954 = vmatmul.mubr.bf16.gmra.mxu0 %v919
  %v955 = vpop.f32.mrf.mxu0
  %v956 = vadd.f32 0.0, %v955
  %v957 = vpop.f32.mrf.mxu0
  %v958 = vpop.f32.mrf.mxu0
  %v959 = vpop.f32.mrf.mxu0
  %960 = vdwg.mxu0
  %v961 = vadd.f32 %v880, %v956
  %v962 = vld [vmem:[%s8] sm:$0x1]
  %v964 = vlaneseq
  %v965 = vshrl.u32 %v964, 7
  %v966 = vsub.s32 0, %v965
  %v967 = vrot.slane %v962, %v966
  %v969 = vadd.f32 %v961, %v967
  %v970 = vmax.f32 %v969, 0.0
  %v971 = vand.u32 2147483647, %v969
  %v972 = vsub.f32 0.0, %v971
  %v973 = vmul.f32 %v972, 1.442695
  %v974 = vpow.pop %v973
  %v975 = vadd.f32 %v974, 1.0
  %v976 = vlog2.pop %v975
  %v977 = vmul.f32 %v976, 0.6931472
  %v978 = vmul.f32 -0.5, %v974
  %v979 = vadd.f32 %v978, 1.0
  %v980 = vmul.f32 %v979, %v974
  %v981 = vand.u32 2147483647, %v974
  %vm982 = vcmp.lt.f32.partialorder %v981, 0.0004427343
  %v983 = vsel %vm982, %v980, %v977
  %v984 = vadd.f32 %v970, %v983
  %v985 = vadd.f32 %v984, 1e-08
  %v986 = vlaneseq
  %v987 = vand.u32 %v986, 127
  %vm988 = vcmp.lt.s32.totalorder %v987, 5
  %v989 = vsel %vm988, %v969, %v985
  %vm990 = vcmask 74752
  %991 = vst.msk [vmem:[%s11] sm:$0x3] %vm990, %v989
  // Predicated region
  $region42: #{encoder_forward.3} parent=0 // pred_check
    _
  $region43: #{encoder_forward.3} parent=0 // pred_check_branch
    %993 = sbr.rel (0) target = $region45
  $region44: #{encoder_forward.3} parent=0 // pred_region
    _
  $region45: #{encoder_forward.3} parent=0 // pred_fallthru
    _
  // Predicated region
  $region46: #{encoder_forward.3} parent=0 // pred_check
    _
  $region47: #{encoder_forward.3} parent=0 // pred_check_branch
    %995 = sbr.rel (0) target = $region49
  $region48: #{encoder_forward.3} parent=0 // pred_region
    _
  $region49: #{encoder_forward.3} parent=0 // pred_fallthru
    _
  // Predicated region
  $region50: #{encoder_forward.3} parent=0 // pred_check
    _
  $region51: #{encoder_forward.3} parent=0 // pred_check_branch
    %997 = sbr.rel (0) target = $region53
  $region52: #{encoder_forward.3} parent=0 // pred_region
    _
  $region53: #{encoder_forward.3} parent=0 // pred_fallthru
    _
  // Predicated region
  $region54: #{encoder_forward.3} parent=0 // pred_check
    _
  $region55: #{encoder_forward.3} parent=0 // pred_check_branch
    %999 = sbr.rel (0) target = $region57
  $region56: #{encoder_forward.3} parent=0 // pred_region
    _
  $region57: #{encoder_forward.3} parent=0 // pred_fallthru
    _

// kernel: encoder_forward.2
$region0: #{encoder_forward.2}
  #allocation0 [shape = 'u32[]', space=smem, size = 0x4, offset = 0x4, fixed_abs, tag = 'smem constant byte address 0x4 - core index']
  #allocation1 [shape = 'u32[144,128]{1,0:T(1,128)}', space=vmem, size = 0x12000, scoped, tag = 'internal scratch']
  #allocation2 [shape = 'f32[1,1]{1,0:T(1,128)S(6)}', space=smem, size = 0x200, scoped, tag = 'scoped memory for encoder_forward.2']
  %s0 = inlined_call_operand.vmem [shape: bf16[16,72], index: 0, kind: input, shape index: {}]
  %s1 = inlined_call_operand.vmem [shape: bf16[16,72], index: 1, kind: input, shape index: {}]
  %s2 = inlined_call_operand.vmem [shape: bf16[16,72], index: 2, kind: input, shape index: {}]
  %s3 = inlined_call_operand.vmem [shape: bf16[3,72,64], index: 3, kind: input, shape index: {}]
  %s4 = inlined_call_operand.vmem [shape: f32[1,64], index: 4, kind: input, shape index: {}]
  %s5 = inlined_call_operand.vmem [shape: f32[64,8], index: 5, kind: input, shape index: {}]
  %s6 = inlined_call_operand.vmem [shape: f32[8,64], index: 6, kind: input, shape index: {}]
  %s7 = inlined_call_operand.vmem [shape: bf16[512,12], index: 7, kind: input, shape index: {}]
  %s8 = inlined_call_operand.vmem [shape: f32[1,12], index: 8, kind: input, shape index: {}]
  %s9 = inlined_call_operand.<no memory space> [shape: f32[1,1], index: 9, kind: input, shape index: {}]
  %s10 = inlined_call_operand.vmem [shape: bf16[16,64], index: 10, kind: output, shape index: {0}]
  %s11 = inlined_call_operand.vmem [shape: f32[2,12], index: 11, kind: output, shape index: {1}]
  %12 = xla_tuple %s10, %s11
  %s13 = sld [smem:[#allocation0]]
  $region58: #{encoder_forward.2} parent=0
    _
  %s15 = ssub.s32 1, %s13
  %s16 = scalar_select 0, %s15, %s13
  %17 = sst [smem:[#allocation2]] %s9
  // Predicated region
  $region2: #{encoder_forward.2} parent=0 // pred_check
    _
  $region3: #{encoder_forward.2} parent=0 // pred_check_branch
    %19 = sbr.rel (0) target = $region5
  $region4: #{encoder_forward.2} parent=0 // pred_region
    _
  $region5: #{encoder_forward.2} parent=0 // pred_fallthru
    _
  // Predicated region
  $region6: #{encoder_forward.2} parent=0 // pred_check
    _
  $region7: #{encoder_forward.2} parent=0 // pred_check_branch
    %21 = sbr.rel (0) target = $region9
  $region8: #{encoder_forward.2} parent=0 // pred_region
    _
  $region9: #{encoder_forward.2} parent=0 // pred_fallthru
    _
  // Predicated region
  $region10: #{encoder_forward.2} parent=0 // pred_check
    _
  $region11: #{encoder_forward.2} parent=0 // pred_check_branch
    %23 = sbr.rel (0) target = $region13
  $region12: #{encoder_forward.2} parent=0 // pred_region
    _
  $region13: #{encoder_forward.2} parent=0 // pred_fallthru
    _
  // Predicated region
  $region14: #{encoder_forward.2} parent=0 // pred_check
    _
  $region15: #{encoder_forward.2} parent=0 // pred_check_branch
    %25 = sbr.rel (0) target = $region17
  $region16: #{encoder_forward.2} parent=0 // pred_region
    _
  $region17: #{encoder_forward.2} parent=0 // pred_fallthru
    _
  // Predicated region
  $region18: #{encoder_forward.2} parent=0 // pred_check
    _
  $region19: #{encoder_forward.2} parent=0 // pred_check_branch
    %27 = sbr.rel (0) target = $region21
  $region20: #{encoder_forward.2} parent=0 // pred_region
    _
  $region21: #{encoder_forward.2} parent=0 // pred_fallthru
    _
  // Predicated region
  $region22: #{encoder_forward.2} parent=0 // pred_check
    _
  $region23: #{encoder_forward.2} parent=0 // pred_check_branch
    %29 = sbr.rel (0) target = $region25
  $region24: #{encoder_forward.2} parent=0 // pred_region
    _
  $region25: #{encoder_forward.2} parent=0 // pred_fallthru
    _
  // Predicated region
  $region26: #{encoder_forward.2} parent=0 // pred_check
    _
  $region27: #{encoder_forward.2} parent=0 // pred_check_branch
    %31 = sbr.rel (0) target = $region29
  $region28: #{encoder_forward.2} parent=0 // pred_region
    _
  $region29: #{encoder_forward.2} parent=0 // pred_fallthru
    _
  // Predicated region
  $region30: #{encoder_forward.2} parent=0 // pred_check
    _
  $region31: #{encoder_forward.2} parent=0 // pred_check_branch
    %33 = sbr.rel (0) target = $region33
  $region32: #{encoder_forward.2} parent=0 // pred_region
    _
  $region33: #{encoder_forward.2} parent=0 // pred_fallthru
    _
  // Predicated region
  $region34: #{encoder_forward.2} parent=0 // pred_check
    _
  $region35: #{encoder_forward.2} parent=0 // pred_check_branch
    %35 = sbr.rel (0) target = $region37
  $region36: #{encoder_forward.2} parent=0 // pred_region
    _
  $region37: #{encoder_forward.2} parent=0 // pred_fallthru
    _
  // Predicated region
  $region38: #{encoder_forward.2} parent=0 // pred_check
    _
  $region39: #{encoder_forward.2} parent=0 // pred_check_branch
    %37 = sbr.rel (0) target = $region41
  $region40: #{encoder_forward.2} parent=0 // pred_region
    _
  $region41: #{encoder_forward.2} parent=0 // pred_fallthru
    _
  %v39 = vld [vmem:[%s0] sm:$0xf]
  %v40 = vld [vmem:[%s0 + $0x4] sm:$0xf]
  %v41 = vld [vmem:[%s3] sm:$0xf]
  %v42 = vld [vmem:[%s3 + $0x4] sm:$0xf]
  %v43 = vld [vmem:[%s3 + $0x8] sm:$0xf]
  %v44 = vld [vmem:[%s3 + $0xc] sm:$0xf]
  %v45 = vld [vmem:[%s3 + $0x10] sm:$0xf]
  %v46 = vld [vmem:[%s3 + $0x14] sm:$0xf]
  %v47 = vld [vmem:[%s3 + $0x18] sm:$0xf]
  %v48 = vld [vmem:[%s3 + $0x1c] sm:$0xf]
  %v49 = vld [vmem:[%s3 + $0x20] sm:$0xf]
  %v50 = vld [vmem:[%s1] sm:$0xf]
  %v51 = vld [vmem:[%s1 + $0x4] sm:$0xf]
  %s52 = scalar_lea.vmem %s3, 36
  %v53 = vld [vmem:[%s52] sm:$0xf]
  %v54 = vld [vmem:[%s52 + $0x4] sm:$0xf]
  %v55 = vld [vmem:[%s52 + $0x8] sm:$0xf]
  %v56 = vld [vmem:[%s52 + $0xc] sm:$0xf]
  %v57 = vld [vmem:[%s52 + $0x10] sm:$0xf]
  %v58 = vld [vmem:[%s52 + $0x14] sm:$0xf]
  %v59 = vld [vmem:[%s52 + $0x18] sm:$0xf]
  %v60 = vld [vmem:[%s52 + $0x1c] sm:$0xf]
  %v61 = vld [vmem:[%s52 + $0x20] sm:$0xf]
  %v64 = vunpack.c.l.b16 %v50
  %v65 = vunpack.c.l.b16 %v51
  %v66 = vpack.c.b16 %v65, %v64
  %v76 = vunpack.c.l.b16 %v53
  %v77 = vunpack.c.l.b16 %v54
  %v78 = vunpack.c.l.b16 %v55
  %v79 = vunpack.c.l.b16 %v56
  %v80 = vunpack.c.l.b16 %v57
  %v81 = vunpack.c.l.b16 %v58
  %v82 = vunpack.c.l.b16 %v59
  %v83 = vunpack.c.l.b16 %v60
  %v84 = vunpack.c.l.b16 %v61
  %v85 = vpack.c.b16 %v77, %v76
  %v86 = vpack.c.b16 %v79, %v78
  %v87 = vpack.c.b16 %v81, %v80
  %v88 = vpack.c.b16 %v83, %v82
  %v89 = vpack.c.b16 %v84, %v84
  %vm94 = vcmask 588800
  %v96 = vsel %vm94, %v66, 0
  %vm98 = vcmask 1043456
  %v100 = vsel %vm98, %v89, 0
  %102 = vmatprep.subr.bf16.mxu0 0
  %103 = vmatpush1.bf16.msra.mxu0 0
  %104 = vmatprep.subr.bf16.mxu0 0
  %105 = vmatpush1.bf16.msra.mxu0 0
  %106 = vmatprep.subr.bf16.mxu0 0
  %107 = vmatpush1.bf16.msra.mxu0 0
  %108 = vmatprep.subr.bf16.mxu0 0
  %109 = vmatpush1.bf16.msra.mxu0 %v100
  %110 = vmatprep.subr.bf16.mxu0 0
  %111 = vmatpush1.bf16.msra.mxu0 %v88
  %112 = vmatprep.subr.bf16.mxu0 0
  %113 = vmatpush1.bf16.msra.mxu0 %v87
  %114 = vmatprep.subr.bf16.mxu0 0
  %115 = vmatpush1.bf16.msra.mxu0 %v86
  %116 = vmatprep.subr.bf16.mxu0 0
  %117 = vmatpush1.bf16.msra.mxu0 %v85
  %118 = vmatprep.subr.bf16.mxu0 0
  %119 = vmatpush2.bf16.msra.mxu0 0
  %120 = vmatprep.subr.bf16.mxu0 0
  %121 = vmatpush2.bf16.msra.mxu0 0
  %122 = vmatprep.subr.bf16.mxu0 0
  %123 = vmatpush2.bf16.msra.mxu0 0
  %124 = vmatprep.subr.bf16.mxu0 0
  %125 = vmatpush2.bf16.msra.mxu0 0
  %126 = vmatprep.subr.bf16.mxu0 0
  %127 = vmatpush2.bf16.msra.mxu0 0
  %128 = vmatprep.subr.bf16.mxu0 0
  %129 = vmatpush2.bf16.msra.mxu0 0
  %130 = vmatprep.subr.bf16.mxu0 0
  %131 = vmatpush2.bf16.msra.mxu0 0
  %132 = vmatprep.subr.bf16.mxu0 0
  %133 = vmatpush2.bf16.msra.mxu0 0
  %134 = vmatprep.mubr.bf16.mxu0 0
  %135 = vmatmul.mubr.bf16.gmra.mxu0 %v96
  %v136 = vpop.f32.mrf.mxu0
  %v137 = vadd.f32 0.0, %v136
  %v138 = vpop.f32.mrf.mxu0
  %v139 = vpop.f32.mrf.mxu0
  %v140 = vadd.f32 0.0, %v139
  %v141 = vpop.f32.mrf.mxu0
  %142 = vdwg.mxu0
  %v145 = vunpack.c.l.b16 %v39
  %v146 = vunpack.c.l.b16 %v40
  %v147 = vpack.c.b16 %v146, %v145
  %v157 = vunpack.c.l.b16 %v41
  %v158 = vunpack.c.l.b16 %v42
  %v159 = vunpack.c.l.b16 %v43
  %v160 = vunpack.c.l.b16 %v44
  %v161 = vunpack.c.l.b16 %v45
  %v162 = vunpack.c.l.b16 %v46
  %v163 = vunpack.c.l.b16 %v47
  %v164 = vunpack.c.l.b16 %v48
  %v165 = vunpack.c.l.b16 %v49
  %v166 = vpack.c.b16 %v158, %v157
  %v167 = vpack.c.b16 %v160, %v159
  %v168 = vpack.c.b16 %v162, %v161
  %v169 = vpack.c.b16 %v164, %v163
  %v170 = vpack.c.b16 %v165, %v165
  %v176 = vsel %vm94, %v147, 0
  %v179 = vsel %vm98, %v170, 0
  %181 = vmatprep.subr.bf16.mxu0 0
  %182 = vmatpush1.bf16.msra.mxu0 0
  %183 = vmatprep.subr.bf16.mxu0 0
  %184 = vmatpush1.bf16.msra.mxu0 0
  %185 = vmatprep.subr.bf16.mxu0 0
  %186 = vmatpush1.bf16.msra.mxu0 0
  %187 = vmatprep.subr.bf16.mxu0 0
  %188 = vmatpush1.bf16.msra.mxu0 %v179
  %189 = vmatprep.subr.bf16.mxu0 0
  %190 = vmatpush1.bf16.msra.mxu0 %v169
  %191 = vmatprep.subr.bf16.mxu0 0
  %192 = vmatpush1.bf16.msra.mxu0 %v168
  %193 = vmatprep.subr.bf16.mxu0 0
  %194 = vmatpush1.bf16.msra.mxu0 %v167
  %195 = vmatprep.subr.bf16.mxu0 0
  %196 = vmatpush1.bf16.msra.mxu0 %v166
  %197 = vmatprep.subr.bf16.mxu0 0
  %198 = vmatpush2.bf16.msra.mxu0 0
  %199 = vmatprep.subr.bf16.mxu0 0
  %200 = vmatpush2.bf16.msra.mxu0 0
  %201 = vmatprep.subr.bf16.mxu0 0
  %202 = vmatpush2.bf16.msra.mxu0 0
  %203 = vmatprep.subr.bf16.mxu0 0
  %204 = vmatpush2.bf16.msra.mxu0 0
  %205 = vmatprep.subr.bf16.mxu0 0
  %206 = vmatpush2.bf16.msra.mxu0 0
  %207 = vmatprep.subr.bf16.mxu0 0
  %208 = vmatpush2.bf16.msra.mxu0 0
  %209 = vmatprep.subr.bf16.mxu0 0
  %210 = vmatpush2.bf16.msra.mxu0 0
  %211 = vmatprep.subr.bf16.mxu0 0
  %212 = vmatpush2.bf16.msra.mxu0 0
  %213 = vmatprep.mubr.bf16.mxu0 0
  %214 = vmatmul.mubr.bf16.gmra.mxu0 %v176
  %v215 = vpop.f32.mrf.mxu0
  %v216 = vadd.f32 %v137, %v215
  %v217 = vpop.f32.mrf.mxu0
  %v218 = vpop.f32.mrf.mxu0
  %v219 = vadd.f32 %v140, %v218
  %v220 = vpop.f32.mrf.mxu0
  %221 = vdwg.mxu0
  %v222 = vld [vmem:[%s2] sm:$0xf]
  %v223 = vld [vmem:[%s2 + $0x4] sm:$0xf]
  %s224 = scalar_lea.vmem %s3, 72
  %v225 = vld [vmem:[%s224] sm:$0xf]
  %v226 = vld [vmem:[%s224 + $0x4] sm:$0xf]
  %v227 = vld [vmem:[%s224 + $0x8] sm:$0xf]
  %v228 = vld [vmem:[%s224 + $0xc] sm:$0xf]
  %v229 = vld [vmem:[%s224 + $0x10] sm:$0xf]
  %v230 = vld [vmem:[%s224 + $0x14] sm:$0xf]
  %v231 = vld [vmem:[%s224 + $0x18] sm:$0xf]
  %v232 = vld [vmem:[%s224 + $0x1c] sm:$0xf]
  %v233 = vld [vmem:[%s224 + $0x20] sm:$0xf]
  %v236 = vunpack.c.l.b16 %v222
  %v237 = vunpack.c.l.b16 %v223
  %v238 = vpack.c.b16 %v237, %v236
  %v248 = vunpack.c.l.b16 %v225
  %v249 = vunpack.c.l.b16 %v226
  %v250 = vunpack.c.l.b16 %v227
  %v251 = vunpack.c.l.b16 %v228
  %v252 = vunpack.c.l.b16 %v229
  %v253 = vunpack.c.l.b16 %v230
  %v254 = vunpack.c.l.b16 %v231
  %v255 = vunpack.c.l.b16 %v232
  %v256 = vunpack.c.l.b16 %v233
  %v257 = vpack.c.b16 %v249, %v248
  %v258 = vpack.c.b16 %v251, %v250
  %v259 = vpack.c.b16 %v253, %v252
  %v260 = vpack.c.b16 %v255, %v254
  %v261 = vpack.c.b16 %v256, %v256
  %v267 = vsel %vm94, %v238, 0
  %v270 = vsel %vm98, %v261, 0
  %272 = vmatprep.subr.bf16.mxu0 0
  %273 = vmatpush1.bf16.msra.mxu0 0
  %274 = vmatprep.subr.bf16.mxu0 0
  %275 = vmatpush1.bf16.msra.mxu0 0
  %276 = vmatprep.subr.bf16.mxu0 0
  %277 = vmatpush1.bf16.msra.mxu0 0
  %278 = vmatprep.subr.bf16.mxu0 0
  %279 = vmatpush1.bf16.msra.mxu0 %v270
  %280 = vmatprep.subr.bf16.mxu0 0
  %281 = vmatpush1.bf16.msra.mxu0 %v260
  %282 = vmatprep.subr.bf16.mxu0 0
  %283 = vmatpush1.bf16.msra.mxu0 %v259
  %284 = vmatprep.subr.bf16.mxu0 0
  %285 = vmatpush1.bf16.msra.mxu0 %v258
  %286 = vmatprep.subr.bf16.mxu0 0
  %287 = vmatpush1.bf16.msra.mxu0 %v257
  %288 = vmatprep.subr.bf16.mxu0 0
  %289 = vmatpush2.bf16.msra.mxu0 0
  %290 = vmatprep.subr.bf16.mxu0 0
  %291 = vmatpush2.bf16.msra.mxu0 0
  %292 = vmatprep.subr.bf16.mxu0 0
  %293 = vmatpush2.bf16.msra.mxu0 0
  %294 = vmatprep.subr.bf16.mxu0 0
  %295 = vmatpush2.bf16.msra.mxu0 0
  %296 = vmatprep.subr.bf16.mxu0 0
  %297 = vmatpush2.bf16.msra.mxu0 0
  %298 = vmatprep.subr.bf16.mxu0 0
  %299 = vmatpush2.bf16.msra.mxu0 0
  %300 = vmatprep.subr.bf16.mxu0 0
  %301 = vmatpush2.bf16.msra.mxu0 0
  %302 = vmatprep.subr.bf16.mxu0 0
  %303 = vmatpush2.bf16.msra.mxu0 0
  %304 = vmatprep.mubr.bf16.mxu0 0
  %305 = vmatmul.mubr.bf16.gmra.mxu0 %v267
  %v306 = vpop.f32.mrf.mxu0
  %v307 = vadd.f32 0.0, %v306
  %v308 = vpop.f32.mrf.mxu0
  %v309 = vpop.f32.mrf.mxu0
  %v310 = vadd.f32 0.0, %v309
  %v311 = vpop.f32.mrf.mxu0
  %312 = vdwg.mxu0
  %v313 = vadd.f32 %v216, %v307
  %v314 = vadd.f32 %v219, %v310
  %v315 = vld [vmem:[%s4] sm:$0x1]
  %v317 = vlaneseq
  %v318 = vshrl.u32 %v317, 7
  %v319 = vsub.s32 0, %v318
  %v320 = vrot.slane %v315, %v319
  %v322 = vadd.f32 %v313, %v320
  %v323 = vadd.f32 %v314, %v320
  %vm324 = vcmask 523264
  %v325 = vsel %vm324, %v322, 0.0
  %v326 = vsel %vm324, %v323, 0.0
  %v327 = vadd.f32 %v325, %v326
  %v328 = vrot.slane %v327, 4
  %v329 = vadd.f32 %v327, %v328
  %v330 = vrot.slane %v329, 2
  %v331 = vadd.f32 %v329, %v330
  %v332 = vrot.slane %v331, 1
  %v333 = vadd.f32 %v331, %v332
  %v334 = vrcp.pop 16.0
  %v335 = vmul.f32 %v333, %v334
  %v336 = vld [vmem:[%s5] sm:$0xff]
  %v337 = vld [vmem:[%s5 + $0x8] sm:$0xff]
  %v338 = vld [vmem:[%s5 + $0x10] sm:$0xff]
  %v339 = vld [vmem:[%s5 + $0x18] sm:$0xff]
  %v340 = vld [vmem:[%s5 + $0x20] sm:$0xff]
  %v341 = vld [vmem:[%s5 + $0x28] sm:$0xff]
  %v342 = vld [vmem:[%s5 + $0x30] sm:$0xff]
  %v343 = vld [vmem:[%s5 + $0x38] sm:$0xff]
  %v345 = vsel %vm324, %v335, 0
  %347 = vmatprep.subr.mxu0 0.0
  %348 = vmatpush1.msra.mxu0 0.0
  %349 = vmatprep.subr.mxu0 0.0
  %350 = vmatpush1.msra.mxu0 0.0
  %351 = vmatprep.subr.mxu0 0.0
  %352 = vmatpush1.msra.mxu0 0.0
  %353 = vmatprep.subr.mxu0 0.0
  %354 = vmatpush1.msra.mxu0 0.0
  %355 = vmatprep.subr.mxu0 0.0
  %356 = vmatpush1.msra.mxu0 0.0
  %357 = vmatprep.subr.mxu0 0.0
  %358 = vmatpush1.msra.mxu0 0.0
  %359 = vmatprep.subr.mxu0 0.0
  %360 = vmatpush1.msra.mxu0 0.0
  %361 = vmatprep.subr.mxu0 0.0
  %362 = vmatpush1.msra.mxu0 0.0
  %363 = vmatprep.subr.mxu0 0.0
  %364 = vmatpush1.msra.mxu0 %v343
  %365 = vmatprep.subr.mxu0 0.0
  %366 = vmatpush1.msra.mxu0 %v342
  %367 = vmatprep.subr.mxu0 0.0
  %368 = vmatpush1.msra.mxu0 %v341
  %369 = vmatprep.subr.mxu0 0.0
  %370 = vmatpush1.msra.mxu0 %v340
  %371 = vmatprep.subr.mxu0 0.0
  %372 = vmatpush1.msra.mxu0 %v339
  %373 = vmatprep.subr.mxu0 0.0
  %374 = vmatpush1.msra.mxu0 %v338
  %375 = vmatprep.subr.mxu0 0.0
  %376 = vmatpush1.msra.mxu0 %v337
  %377 = vmatprep.subr.mxu0 0.0
  %378 = vmatpush1.msra.mxu0 %v336
  %379 = vmatprep.subr.mxu0 0.0
  %380 = vmatpush2.msra.mxu0 0.0
  %381 = vmatprep.subr.mxu0 0.0
  %382 = vmatpush2.msra.mxu0 0.0
  %383 = vmatprep.subr.mxu0 0.0
  %384 = vmatpush2.msra.mxu0 0.0
  %385 = vmatprep.subr.mxu0 0.0
  %386 = vmatpush2.msra.mxu0 0.0
  %387 = vmatprep.subr.mxu0 0.0
  %388 = vmatpush2.msra.mxu0 0.0
  %389 = vmatprep.subr.mxu0 0.0
  %390 = vmatpush2.msra.mxu0 0.0
  %391 = vmatprep.subr.mxu0 0.0
  %392 = vmatpush2.msra.mxu0 0.0
  %393 = vmatprep.subr.mxu0 0.0
  %394 = vmatpush2.msra.mxu0 0.0
  %395 = vmatprep.subr.mxu0 0.0
  %396 = vmatpush2.msra.mxu0 0.0
  %397 = vmatprep.subr.mxu0 0.0
  %398 = vmatpush2.msra.mxu0 0.0
  %399 = vmatprep.subr.mxu0 0.0
  %400 = vmatpush2.msra.mxu0 0.0
  %401 = vmatprep.subr.mxu0 0.0
  %402 = vmatpush2.msra.mxu0 0.0
  %403 = vmatprep.subr.mxu0 0.0
  %404 = vmatpush2.msra.mxu0 0.0
  %405 = vmatprep.subr.mxu0 0.0
  %406 = vmatpush2.msra.mxu0 0.0
  %407 = vmatprep.subr.mxu0 0.0
  %408 = vmatpush2.msra.mxu0 0.0
  %409 = vmatprep.subr.mxu0 0.0
  %410 = vmatpush2.msra.mxu0 0.0
  %411 = vmatprep.mubr.f32.mxu0 0.0
  %412 = vmatmul.mubr.f32.gmra.mxu0 %v345
  %v413 = vpop.f32.mrf.mxu0
  %v414 = vadd.f32 0.0, %v413
  %v415 = vpop.f32.mrf.mxu0
  %416 = vdwg.mxu0
  %v417 = vld [vmem:[%s6] sm:$0xff]
  %vm418 = vcmask 64512
  %v420 = vsel %vm418, %v414, 0
  %422 = vmatprep.subr.mxu0 0.0
  %423 = vmatpush1.msra.mxu0 0.0
  %424 = vmatprep.subr.mxu0 0.0
  %425 = vmatpush1.msra.mxu0 0.0
  %426 = vmatprep.subr.mxu0 0.0
  %427 = vmatpush1.msra.mxu0 0.0
  %428 = vmatprep.subr.mxu0 0.0
  %429 = vmatpush1.msra.mxu0 0.0
  %430 = vmatprep.subr.mxu0 0.0
  %431 = vmatpush1.msra.mxu0 0.0
  %432 = vmatprep.subr.mxu0 0.0
  %433 = vmatpush1.msra.mxu0 0.0
  %434 = vmatprep.subr.mxu0 0.0
  %435 = vmatpush1.msra.mxu0 0.0
  %436 = vmatprep.subr.mxu0 0.0
  %437 = vmatpush1.msra.mxu0 0.0
  %438 = vmatprep.subr.mxu0 0.0
  %439 = vmatpush1.msra.mxu0 0.0
  %440 = vmatprep.subr.mxu0 0.0
  %441 = vmatpush1.msra.mxu0 0.0
  %442 = vmatprep.subr.mxu0 0.0
  %443 = vmatpush1.msra.mxu0 0.0
  %444 = vmatprep.subr.mxu0 0.0
  %445 = vmatpush1.msra.mxu0 0.0
  %446 = vmatprep.subr.mxu0 0.0
  %447 = vmatpush1.msra.mxu0 0.0
  %448 = vmatprep.subr.mxu0 0.0
  %449 = vmatpush1.msra.mxu0 0.0
  %450 = vmatprep.subr.mxu0 0.0
  %451 = vmatpush1.msra.mxu0 0.0
  %452 = vmatprep.subr.mxu0 0.0
  %453 = vmatpush1.msra.mxu0 %v417
  %454 = vmatprep.subr.mxu0 0.0
  %455 = vmatpush2.msra.mxu0 0.0
  %456 = vmatprep.subr.mxu0 0.0
  %457 = vmatpush2.msra.mxu0 0.0
  %458 = vmatprep.subr.mxu0 0.0
  %459 = vmatpush2.msra.mxu0 0.0
  %460 = vmatprep.subr.mxu0 0.0
  %461 = vmatpush2.msra.mxu0 0.0
  %462 = vmatprep.subr.mxu0 0.0
  %463 = vmatpush2.msra.mxu0 0.0
  %464 = vmatprep.subr.mxu0 0.0
  %465 = vmatpush2.msra.mxu0 0.0
  %466 = vmatprep.subr.mxu0 0.0
  %467 = vmatpush2.msra.mxu0 0.0
  %468 = vmatprep.subr.mxu0 0.0
  %469 = vmatpush2.msra.mxu0 0.0
  %470 = vmatprep.subr.mxu0 0.0
  %471 = vmatpush2.msra.mxu0 0.0
  %472 = vmatprep.subr.mxu0 0.0
  %473 = vmatpush2.msra.mxu0 0.0
  %474 = vmatprep.subr.mxu0 0.0
  %475 = vmatpush2.msra.mxu0 0.0
  %476 = vmatprep.subr.mxu0 0.0
  %477 = vmatpush2.msra.mxu0 0.0
  %478 = vmatprep.subr.mxu0 0.0
  %479 = vmatpush2.msra.mxu0 0.0
  %480 = vmatprep.subr.mxu0 0.0
  %481 = vmatpush2.msra.mxu0 0.0
  %482 = vmatprep.subr.mxu0 0.0
  %483 = vmatpush2.msra.mxu0 0.0
  %484 = vmatprep.subr.mxu0 0.0
  %485 = vmatpush2.msra.mxu0 0.0
  %486 = vmatprep.mubr.f32.mxu0 0.0
  %487 = vmatmul.mubr.f32.gmra.mxu0 %v420
  %v488 = vpop.f32.mrf.mxu0
  %v489 = vadd.f32 0.0, %v488
  %v490 = vpop.f32.mrf.mxu0
  %491 = vdwg.mxu0
  %v492 = vlaneseq
  %v493 = vshrl.u32 %v492, 7
  %v494 = vsub.s32 0, %v493
  %v495 = vrot.slane %v489, %v494
  %v496 = vsub.f32 %v322, %v495
  %v497 = vsub.f32 %v323, %v495
  %v498 = vmul.f32 %v496, %v496
  %v499 = vmul.f32 %v497, %v497
  %v500 = vsel %vm324, %v498, 0.0
  %v501 = vsel %vm324, %v499, 0.0
  %v502 = vadd.f32 %v500, %v501
  %v503 = vrot.slane %v502, 4
  %v504 = vadd.f32 %v502, %v503
  %v505 = vrot.slane %v504, 2
  %v506 = vadd.f32 %v504, %v505
  %v507 = vrot.slane %v506, 1
  %v508 = vadd.f32 %v506, %v507
  %v509 = vmul.f32 %v508, %v334
  %v511 = vsel %vm324, %v509, 0
  %513 = vmatprep.subr.mxu0 0.0
  %514 = vmatpush1.msra.mxu0 0.0
  %515 = vmatprep.subr.mxu0 0.0
  %516 = vmatpush1.msra.mxu0 0.0
  %517 = vmatprep.subr.mxu0 0.0
  %518 = vmatpush1.msra.mxu0 0.0
  %519 = vmatprep.subr.mxu0 0.0
  %520 = vmatpush1.msra.mxu0 0.0
  %521 = vmatprep.subr.mxu0 0.0
  %522 = vmatpush1.msra.mxu0 0.0
  %523 = vmatprep.subr.mxu0 0.0
  %524 = vmatpush1.msra.mxu0 0.0
  %525 = vmatprep.subr.mxu0 0.0
  %526 = vmatpush1.msra.mxu0 0.0
  %527 = vmatprep.subr.mxu0 0.0
  %528 = vmatpush1.msra.mxu0 0.0
  %529 = vmatprep.subr.mxu0 0.0
  %530 = vmatpush1.msra.mxu0 %v343
  %531 = vmatprep.subr.mxu0 0.0
  %532 = vmatpush1.msra.mxu0 %v342
  %533 = vmatprep.subr.mxu0 0.0
  %534 = vmatpush1.msra.mxu0 %v341
  %535 = vmatprep.subr.mxu0 0.0
  %536 = vmatpush1.msra.mxu0 %v340
  %537 = vmatprep.subr.mxu0 0.0
  %538 = vmatpush1.msra.mxu0 %v339
  %539 = vmatprep.subr.mxu0 0.0
  %540 = vmatpush1.msra.mxu0 %v338
  %541 = vmatprep.subr.mxu0 0.0
  %542 = vmatpush1.msra.mxu0 %v337
  %543 = vmatprep.subr.mxu0 0.0
  %544 = vmatpush1.msra.mxu0 %v336
  %545 = vmatprep.subr.mxu0 0.0
  %546 = vmatpush2.msra.mxu0 0.0
  %547 = vmatprep.subr.mxu0 0.0
  %548 = vmatpush2.msra.mxu0 0.0
  %549 = vmatprep.subr.mxu0 0.0
  %550 = vmatpush2.msra.mxu0 0.0
  %551 = vmatprep.subr.mxu0 0.0
  %552 = vmatpush2.msra.mxu0 0.0
  %553 = vmatprep.subr.mxu0 0.0
  %554 = vmatpush2.msra.mxu0 0.0
  %555 = vmatprep.subr.mxu0 0.0
  %556 = vmatpush2.msra.mxu0 0.0
  %557 = vmatprep.subr.mxu0 0.0
  %558 = vmatpush2.msra.mxu0 0.0
  %559 = vmatprep.subr.mxu0 0.0
  %560 = vmatpush2.msra.mxu0 0.0
  %561 = vmatprep.subr.mxu0 0.0
  %562 = vmatpush2.msra.mxu0 0.0
  %563 = vmatprep.subr.mxu0 0.0
  %564 = vmatpush2.msra.mxu0 0.0
  %565 = vmatprep.subr.mxu0 0.0
  %566 = vmatpush2.msra.mxu0 0.0
  %567 = vmatprep.subr.mxu0 0.0
  %568 = vmatpush2.msra.mxu0 0.0
  %569 = vmatprep.subr.mxu0 0.0
  %570 = vmatpush2.msra.mxu0 0.0
  %571 = vmatprep.subr.mxu0 0.0
  %572 = vmatpush2.msra.mxu0 0.0
  %573 = vmatprep.subr.mxu0 0.0
  %574 = vmatpush2.msra.mxu0 0.0
  %575 = vmatprep.subr.mxu0 0.0
  %576 = vmatpush2.msra.mxu0 0.0
  %577 = vmatprep.mubr.f32.mxu0 0.0
  %578 = vmatmul.mubr.f32.gmra.mxu0 %v511
  %v579 = vpop.f32.mrf.mxu0
  %v580 = vadd.f32 0.0, %v579
  %v581 = vpop.f32.mrf.mxu0
  %582 = vdwg.mxu0
  %v584 = vsel %vm418, %v580, 0
  %586 = vmatprep.subr.mxu0 0.0
  %587 = vmatpush1.msra.mxu0 0.0
  %588 = vmatprep.subr.mxu0 0.0
  %589 = vmatpush1.msra.mxu0 0.0
  %590 = vmatprep.subr.mxu0 0.0
  %591 = vmatpush1.msra.mxu0 0.0
  %592 = vmatprep.subr.mxu0 0.0
  %593 = vmatpush1.msra.mxu0 0.0
  %594 = vmatprep.subr.mxu0 0.0
  %595 = vmatpush1.msra.mxu0 0.0
  %596 = vmatprep.subr.mxu0 0.0
  %597 = vmatpush1.msra.mxu0 0.0
  %598 = vmatprep.subr.mxu0 0.0
  %599 = vmatpush1.msra.mxu0 0.0
  %600 = vmatprep.subr.mxu0 0.0
  %601 = vmatpush1.msra.mxu0 0.0
  %602 = vmatprep.subr.mxu0 0.0
  %603 = vmatpush1.msra.mxu0 0.0
  %604 = vmatprep.subr.mxu0 0.0
  %605 = vmatpush1.msra.mxu0 0.0
  %606 = vmatprep.subr.mxu0 0.0
  %607 = vmatpush1.msra.mxu0 0.0
  %608 = vmatprep.subr.mxu0 0.0
  %609 = vmatpush1.msra.mxu0 0.0
  %610 = vmatprep.subr.mxu0 0.0
  %611 = vmatpush1.msra.mxu0 0.0
  %612 = vmatprep.subr.mxu0 0.0
  %613 = vmatpush1.msra.mxu0 0.0
  %614 = vmatprep.subr.mxu0 0.0
  %615 = vmatpush1.msra.mxu0 0.0
  %616 = vmatprep.subr.mxu0 0.0
  %617 = vmatpush1.msra.mxu0 %v417
  %618 = vmatprep.subr.mxu0 0.0
  %619 = vmatpush2.msra.mxu0 0.0
  %620 = vmatprep.subr.mxu0 0.0
  %621 = vmatpush2.msra.mxu0 0.0
  %622 = vmatprep.subr.mxu0 0.0
  %623 = vmatpush2.msra.mxu0 0.0
  %624 = vmatprep.subr.mxu0 0.0
  %625 = vmatpush2.msra.mxu0 0.0
  %626 = vmatprep.subr.mxu0 0.0
  %627 = vmatpush2.msra.mxu0 0.0
  %628 = vmatprep.subr.mxu0 0.0
  %629 = vmatpush2.msra.mxu0 0.0
  %630 = vmatprep.subr.mxu0 0.0
  %631 = vmatpush2.msra.mxu0 0.0
  %632 = vmatprep.subr.mxu0 0.0
  %633 = vmatpush2.msra.mxu0 0.0
  %634 = vmatprep.subr.mxu0 0.0
  %635 = vmatpush2.msra.mxu0 0.0
  %636 = vmatprep.subr.mxu0 0.0
  %637 = vmatpush2.msra.mxu0 0.0
  %638 = vmatprep.subr.mxu0 0.0
  %639 = vmatpush2.msra.mxu0 0.0
  %640 = vmatprep.subr.mxu0 0.0
  %641 = vmatpush2.msra.mxu0 0.0
  %642 = vmatprep.subr.mxu0 0.0
  %643 = vmatpush2.msra.mxu0 0.0
  %644 = vmatprep.subr.mxu0 0.0
  %645 = vmatpush2.msra.mxu0 0.0
  %646 = vmatprep.subr.mxu0 0.0
  %647 = vmatpush2.msra.mxu0 0.0
  %648 = vmatprep.subr.mxu0 0.0
  %649 = vmatpush2.msra.mxu0 0.0
  %650 = vmatprep.mubr.f32.mxu0 0.0
  %651 = vmatmul.mubr.f32.gmra.mxu0 %v584
  %v652 = vpop.f32.mrf.mxu0
  %v653 = vadd.f32 1e-05, %v652
  %v654 = vpop.f32.mrf.mxu0
  %655 = vdwg.mxu0
  %v656 = vrsqrt.pop %v653
  %v657 = vlaneseq
  %v658 = vshrl.u32 %v657, 7
  %v659 = vsub.s32 0, %v658
  %v660 = vrot.slane %v656, %v659
  %v661 = vmul.f32 %v496, %v660
  %v662 = vmul.f32 %v497, %v660
  %s663 = sld [smem:[#allocation2]]
  %vm664 = vcmp.gt.f32.partialorder %v661, 0.0
  %vm665 = vcmp.gt.f32.partialorder %v662, 0.0
  %v666 = vstv %s663
  %v667 = vmul.f32 %v666, %v661
  %v668 = vmul.f32 %v666, %v662
  %v669 = vsel %vm664, %v661, %v667
  %v670 = vsel %vm665, %v662, %v668
  %v671 = vpack.c.bf16 %v670, %v669
  %v673 = vunpack.c.l.b16 %v671
  %v674 = vunpack.c.h.b16 %v671
  %v675 = vpack.c.b16 %v673, %v673
  %v676 = vpack.c.b16 %v674, %v674
  %vm679 = vcmask 519168
  %680 = vst.msk [vmem:[%s10] sm:$0xf] %vm679, %v675
  %681 = vst.msk [vmem:[%s10 + $0x4] sm:$0xf] %vm679, %v676
  %v682 = vld [vmem:[%s10] sm:$0x1]
  %v683 = vld [vmem:[%s7] sm:$0xf]
  %v684 = vld [vmem:[%s7 + $0x4] sm:$0xf]
  %v685 = vld [vmem:[%s7 + $0x8] sm:$0xf]
  %v686 = vld [vmem:[%s7 + $0xc] sm:$0xf]
  %v687 = vld [vmem:[%s7 + $0x10] sm:$0xf]
  %v688 = vld [vmem:[%s7 + $0x14] sm:$0xf]
  %v689 = vld [vmem:[%s7 + $0x18] sm:$0xf]
  %v690 = vld [vmem:[%s7 + $0x1c] sm:$0xf]
  %v691 = vld [vmem:[%s10] sm:$0x2]
  %v692 = vld [vmem:[%s7 + $0x20] sm:$0xf]
  %v693 = vld [vmem:[%s7 + $0x24] sm:$0xf]
  %v694 = vld [vmem:[%s7 + $0x28] sm:$0xf]
  %v695 = vld [vmem:[%s7 + $0x2c] sm:$0xf]
  %v696 = vld [vmem:[%s7 + $0x30] sm:$0xf]
  %v697 = vld [vmem:[%s7 + $0x34] sm:$0xf]
  %v698 = vld [vmem:[%s7 + $0x38] sm:$0xf]
  %v699 = vld [vmem:[%s7 + $0x3c] sm:$0xf]
  %v701 = vunpack.c.l.b16 %v691
  %v702 = vpack.c.b16 %v701, %v701
  %v703 = vrot.slane %v702, 1
  %v712 = vunpack.c.l.b16 %v692
  %v713 = vunpack.c.l.b16 %v693
  %v714 = vunpack.c.l.b16 %v694
  %v715 = vunpack.c.l.b16 %v695
  %v716 = vunpack.c.l.b16 %v696
  %v717 = vunpack.c.l.b16 %v697
  %v718 = vunpack.c.l.b16 %v698
  %v719 = vunpack.c.l.b16 %v699
  %v720 = vpack.c.b16 %v713, %v712
  %v721 = vpack.c.b16 %v715, %v714
  %v722 = vpack.c.b16 %v717, %v716
  %v723 = vpack.c.b16 %v719, %v718
  %v729 = vsel %vm324, %v703, 0
  %731 = vmatprep.subr.bf16.mxu0 0
  %732 = vmatpush1.bf16.msra.mxu0 0
  %733 = vmatprep.subr.bf16.mxu0 0
  %734 = vmatpush1.bf16.msra.mxu0 0
  %735 = vmatprep.subr.bf16.mxu0 0
  %736 = vmatpush1.bf16.msra.mxu0 0
  %737 = vmatprep.subr.bf16.mxu0 0
  %738 = vmatpush1.bf16.msra.mxu0 0
  %739 = vmatprep.subr.bf16.mxu0 0
  %740 = vmatpush1.bf16.msra.mxu0 %v723
  %741 = vmatprep.subr.bf16.mxu0 0
  %742 = vmatpush1.bf16.msra.mxu0 %v722
  %743 = vmatprep.subr.bf16.mxu0 0
  %744 = vmatpush1.bf16.msra.mxu0 %v721
  %745 = vmatprep.subr.bf16.mxu0 0
  %746 = vmatpush1.bf16.msra.mxu0 %v720
  %747 = vmatprep.subr.bf16.mxu0 0
  %748 = vmatpush2.bf16.msra.mxu0 0
  %749 = vmatprep.subr.bf16.mxu0 0
  %750 = vmatpush2.bf16.msra.mxu0 0
  %751 = vmatprep.subr.bf16.mxu0 0
  %752 = vmatpush2.bf16.msra.mxu0 0
  %753 = vmatprep.subr.bf16.mxu0 0
  %754 = vmatpush2.bf16.msra.mxu0 0
  %755 = vmatprep.subr.bf16.mxu0 0
  %756 = vmatpush2.bf16.msra.mxu0 0
  %757 = vmatprep.subr.bf16.mxu0 0
  %758 = vmatpush2.bf16.msra.mxu0 0
  %759 = vmatprep.subr.bf16.mxu0 0
  %760 = vmatpush2.bf16.msra.mxu0 0
  %761 = vmatprep.subr.bf16.mxu0 0
  %762 = vmatpush2.bf16.msra.mxu0 0
  %763 = vmatprep.mubr.bf16.mxu0 0
  %764 = vmatmul.mubr.bf16.gmra.mxu0 %v729
  %v765 = vpop.f32.mrf.mxu0
  %v766 = vadd.f32 0.0, %v765
  %v767 = vpop.f32.mrf.mxu0
  %v768 = vpop.f32.mrf.mxu0
  %v769 = vpop.f32.mrf.mxu0
  %770 = vdwg.mxu0
  %v779 = vunpack.c.l.b16 %v683
  %v780 = vunpack.c.l.b16 %v684
  %v781 = vunpack.c.l.b16 %v685
  %v782 = vunpack.c.l.b16 %v686
  %v783 = vunpack.c.l.b16 %v687
  %v784 = vunpack.c.l.b16 %v688
  %v785 = vunpack.c.l.b16 %v689
  %v786 = vunpack.c.l.b16 %v690
  %v787 = vpack.c.b16 %v780, %v779
  %v788 = vpack.c.b16 %v782, %v781
  %v789 = vpack.c.b16 %v784, %v783
  %v790 = vpack.c.b16 %v786, %v785
  %v796 = vsel %vm324, %v682, 0
  %798 = vmatprep.subr.bf16.mxu0 0
  %799 = vmatpush1.bf16.msra.mxu0 0
  %800 = vmatprep.subr.bf16.mxu0 0
  %801 = vmatpush1.bf16.msra.mxu0 0
  %802 = vmatprep.subr.bf16.mxu0 0
  %803 = vmatpush1.bf16.msra.mxu0 0
  %804 = vmatprep.subr.bf16.mxu0 0
  %805 = vmatpush1.bf16.msra.mxu0 0
  %806 = vmatprep.subr.bf16.mxu0 0
  %807 = vmatpush1.bf16.msra.mxu0 %v790
  %808 = vmatprep.subr.bf16.mxu0 0
  %809 = vmatpush1.bf16.msra.mxu0 %v789
  %810 = vmatprep.subr.bf16.mxu0 0
  %811 = vmatpush1.bf16.msra.mxu0 %v788
  %812 = vmatprep.subr.bf16.mxu0 0
  %813 = vmatpush1.bf16.msra.mxu0 %v787
  %814 = vmatprep.subr.bf16.mxu0 0
  %815 = vmatpush2.bf16.msra.mxu0 0
  %816 = vmatprep.subr.bf16.mxu0 0
  %817 = vmatpush2.bf16.msra.mxu0 0
  %818 = vmatprep.subr.bf16.mxu0 0
  %819 = vmatpush2.bf16.msra.mxu0 0
  %820 = vmatprep.subr.bf16.mxu0 0
  %821 = vmatpush2.bf16.msra.mxu0 0
  %822 = vmatprep.subr.bf16.mxu0 0
  %823 = vmatpush2.bf16.msra.mxu0 0
  %824 = vmatprep.subr.bf16.mxu0 0
  %825 = vmatpush2.bf16.msra.mxu0 0
  %826 = vmatprep.subr.bf16.mxu0 0
  %827 = vmatpush2.bf16.msra.mxu0 0
  %828 = vmatprep.subr.bf16.mxu0 0
  %829 = vmatpush2.bf16.msra.mxu0 0
  %830 = vmatprep.mubr.bf16.mxu0 0
  %831 = vmatmul.mubr.bf16.gmra.mxu0 %v796
  %v832 = vpop.f32.mrf.mxu0
  %v833 = vadd.f32 %v766, %v832
  %v834 = vpop.f32.mrf.mxu0
  %v835 = vpop.f32.mrf.mxu0
  %v836 = vpop.f32.mrf.mxu0
  %837 = vdwg.mxu0
  %v838 = vld [vmem:[%s10] sm:$0x4]
  %v839 = vld [vmem:[%s7 + $0x40] sm:$0xf]
  %v840 = vld [vmem:[%s7 + $0x44] sm:$0xf]
  %v841 = vld [vmem:[%s7 + $0x48] sm:$0xf]
  %v842 = vld [vmem:[%s7 + $0x4c] sm:$0xf]
  %v843 = vld [vmem:[%s7 + $0x50] sm:$0xf]
  %v844 = vld [vmem:[%s7 + $0x54] sm:$0xf]
  %v845 = vld [vmem:[%s7 + $0x58] sm:$0xf]
  %v846 = vld [vmem:[%s7 + $0x5c] sm:$0xf]
  %v848 = vunpack.c.l.b16 %v838
  %v849 = vpack.c.b16 %v848, %v848
  %v850 = vrot.slane %v849, 2
  %v859 = vunpack.c.l.b16 %v839
  %v860 = vunpack.c.l.b16 %v840
  %v861 = vunpack.c.l.b16 %v841
  %v862 = vunpack.c.l.b16 %v842
  %v863 = vunpack.c.l.b16 %v843
  %v864 = vunpack.c.l.b16 %v844
  %v865 = vunpack.c.l.b16 %v845
  %v866 = vunpack.c.l.b16 %v846
  %v867 = vpack.c.b16 %v860, %v859
  %v868 = vpack.c.b16 %v862, %v861
  %v869 = vpack.c.b16 %v864, %v863
  %v870 = vpack.c.b16 %v866, %v865
  %v876 = vsel %vm324, %v850, 0
  %878 = vmatprep.subr.bf16.mxu0 0
  %879 = vmatpush1.bf16.msra.mxu0 0
  %880 = vmatprep.subr.bf16.mxu0 0
  %881 = vmatpush1.bf16.msra.mxu0 0
  %882 = vmatprep.subr.bf16.mxu0 0
  %883 = vmatpush1.bf16.msra.mxu0 0
  %884 = vmatprep.subr.bf16.mxu0 0
  %885 = vmatpush1.bf16.msra.mxu0 0
  %886 = vmatprep.subr.bf16.mxu0 0
  %887 = vmatpush1.bf16.msra.mxu0 %v870
  %888 = vmatprep.subr.bf16.mxu0 0
  %889 = vmatpush1.bf16.msra.mxu0 %v869
  %890 = vmatprep.subr.bf16.mxu0 0
  %891 = vmatpush1.bf16.msra.mxu0 %v868
  %892 = vmatprep.subr.bf16.mxu0 0
  %893 = vmatpush1.bf16.msra.mxu0 %v867
  %894 = vmatprep.subr.bf16.mxu0 0
  %895 = vmatpush2.bf16.msra.mxu0 0
  %896 = vmatprep.subr.bf16.mxu0 0
  %897 = vmatpush2.bf16.msra.mxu0 0
  %898 = vmatprep.subr.bf16.mxu0 0
  %899 = vmatpush2.bf16.msra.mxu0 0
  %900 = vmatprep.subr.bf16.mxu0 0
  %901 = vmatpush2.bf16.msra.mxu0 0
  %902 = vmatprep.subr.bf16.mxu0 0
  %903 = vmatpush2.bf16.msra.mxu0 0
  %904 = vmatprep.subr.bf16.mxu0 0
  %905 = vmatpush2.bf16.msra.mxu0 0
  %906 = vmatprep.subr.bf16.mxu0 0
  %907 = vmatpush2.bf16.msra.mxu0 0
  %908 = vmatprep.subr.bf16.mxu0 0
  %909 = vmatpush2.bf16.msra.mxu0 0
  %910 = vmatprep.mubr.bf16.mxu0 0
  %911 = vmatmul.mubr.bf16.gmra.mxu0 %v876
  %v912 = vpop.f32.mrf.mxu0
  %v913 = vadd.f32 0.0, %v912
  %v914 = vpop.f32.mrf.mxu0
  %v915 = vpop.f32.mrf.mxu0
  %v916 = vpop.f32.mrf.mxu0
  %917 = vdwg.mxu0
  %v918 = vadd.f32 %v833, %v913
  %v919 = vld [vmem:[%s10] sm:$0x8]
  %v920 = vld [vmem:[%s7 + $0x60] sm:$0xf]
  %v921 = vld [vmem:[%s7 + $0x64] sm:$0xf]
  %v922 = vld [vmem:[%s7 + $0x68] sm:$0xf]
  %v923 = vld [vmem:[%s7 + $0x6c] sm:$0xf]
  %v924 = vld [vmem:[%s7 + $0x70] sm:$0xf]
  %v925 = vld [vmem:[%s7 + $0x74] sm:$0xf]
  %v926 = vld [vmem:[%s7 + $0x78] sm:$0xf]
  %v927 = vld [vmem:[%s7 + $0x7c] sm:$0xf]
  %v929 = vunpack.c.l.b16 %v919
  %v930 = vpack.c.b16 %v929, %v929
  %v931 = vrot.slane %v930, 3
  %v940 = vunpack.c.l.b16 %v920
  %v941 = vunpack.c.l.b16 %v921
  %v942 = vunpack.c.l.b16 %v922
  %v943 = vunpack.c.l.b16 %v923
  %v944 = vunpack.c.l.b16 %v924
  %v945 = vunpack.c.l.b16 %v925
  %v946 = vunpack.c.l.b16 %v926
  %v947 = vunpack.c.l.b16 %v927
  %v948 = vpack.c.b16 %v941, %v940
  %v949 = vpack.c.b16 %v943, %v942
  %v950 = vpack.c.b16 %v945, %v944
  %v951 = vpack.c.b16 %v947, %v946
  %v957 = vsel %vm324, %v931, 0
  %959 = vmatprep.subr.bf16.mxu0 0
  %960 = vmatpush1.bf16.msra.mxu0 0
  %961 = vmatprep.subr.bf16.mxu0 0
  %962 = vmatpush1.bf16.msra.mxu0 0
  %963 = vmatprep.subr.bf16.mxu0 0
  %964 = vmatpush1.bf16.msra.mxu0 0
  %965 = vmatprep.subr.bf16.mxu0 0
  %966 = vmatpush1.bf16.msra.mxu0 0
  %967 = vmatprep.subr.bf16.mxu0 0
  %968 = vmatpush1.bf16.msra.mxu0 %v951
  %969 = vmatprep.subr.bf16.mxu0 0
  %970 = vmatpush1.bf16.msra.mxu0 %v950
  %971 = vmatprep.subr.bf16.mxu0 0
  %972 = vmatpush1.bf16.msra.mxu0 %v949
  %973 = vmatprep.subr.bf16.mxu0 0
  %974 = vmatpush1.bf16.msra.mxu0 %v948
  %975 = vmatprep.subr.bf16.mxu0 0
  %976 = vmatpush2.bf16.msra.mxu0 0
  %977 = vmatprep.subr.bf16.mxu0 0
  %978 = vmatpush2.bf16.msra.mxu0 0
  %979 = vmatprep.subr.bf16.mxu0 0
  %980 = vmatpush2.bf16.msra.mxu0 0
  %981 = vmatprep.subr.bf16.mxu0 0
  %982 = vmatpush2.bf16.msra.mxu0 0
  %983 = vmatprep.subr.bf16.mxu0 0
  %984 = vmatpush2.bf16.msra.mxu0 0
  %985 = vmatprep.subr.bf16.mxu0 0
  %986 = vmatpush2.bf16.msra.mxu0 0
  %987 = vmatprep.subr.bf16.mxu0 0
  %988 = vmatpush2.bf16.msra.mxu0 0
  %989 = vmatprep.subr.bf16.mxu0 0
  %990 = vmatpush2.bf16.msra.mxu0 0
  %991 = vmatprep.mubr.bf16.mxu0 0
  %992 = vmatmul.mubr.bf16.gmra.mxu0 %v957
  %v993 = vpop.f32.mrf.mxu0
  %v994 = vadd.f32 0.0, %v993
  %v995 = vpop.f32.mrf.mxu0
  %v996 = vpop.f32.mrf.mxu0
  %v997 = vpop.f32.mrf.mxu0
  %998 = vdwg.mxu0
  %v999 = vadd.f32 %v918, %v994
  %v1000 = vld [vmem:[%s10 + $0x4] sm:$0x1]
  %v1001 = vld [vmem:[%s7 + $0x80] sm:$0xf]
  %v1002 = vld [vmem:[%s7 + $0x84] sm:$0xf]
  %v1003 = vld [vmem:[%s7 + $0x88] sm:$0xf]
  %v1004 = vld [vmem:[%s7 + $0x8c] sm:$0xf]
  %v1005 = vld [vmem:[%s7 + $0x90] sm:$0xf]
  %v1006 = vld [vmem:[%s7 + $0x94] sm:$0xf]
  %v1007 = vld [vmem:[%s7 + $0x98] sm:$0xf]
  %v1008 = vld [vmem:[%s7 + $0x9c] sm:$0xf]
  %v1017 = vunpack.c.l.b16 %v1001
  %v1018 = vunpack.c.l.b16 %v1002
  %v1019 = vunpack.c.l.b16 %v1003
  %v1020 = vunpack.c.l.b16 %v1004
  %v1021 = vunpack.c.l.b16 %v1005
  %v1022 = vunpack.c.l.b16 %v1006
  %v1023 = vunpack.c.l.b16 %v1007
  %v1024 = vunpack.c.l.b16 %v1008
  %v1025 = vpack.c.b16 %v1018, %v1017
  %v1026 = vpack.c.b16 %v1020, %v1019
  %v1027 = vpack.c.b16 %v1022, %v1021
  %v1028 = vpack.c.b16 %v1024, %v1023
  %v1034 = vsel %vm324, %v1000, 0
  %1036 = vmatprep.subr.bf16.mxu0 0
  %1037 = vmatpush1.bf16.msra.mxu0 0
  %1038 = vmatprep.subr.bf16.mxu0 0
  %1039 = vmatpush1.bf16.msra.mxu0 0
  %1040 = vmatprep.subr.bf16.mxu0 0
  %1041 = vmatpush1.bf16.msra.mxu0 0
  %1042 = vmatprep.subr.bf16.mxu0 0
  %1043 = vmatpush1.bf16.msra.mxu0 0
  %1044 = vmatprep.subr.bf16.mxu0 0
  %1045 = vmatpush1.bf16.msra.mxu0 %v1028
  %1046 = vmatprep.subr.bf16.mxu0 0
  %1047 = vmatpush1.bf16.msra.mxu0 %v1027
  %1048 = vmatprep.subr.bf16.mxu0 0
  %1049 = vmatpush1.bf16.msra.mxu0 %v1026
  %1050 = vmatprep.subr.bf16.mxu0 0
  %1051 = vmatpush1.bf16.msra.mxu0 %v1025
  %1052 = vmatprep.subr.bf16.mxu0 0
  %1053 = vmatpush2.bf16.msra.mxu0 0
  %1054 = vmatprep.subr.bf16.mxu0 0
  %1055 = vmatpush2.bf16.msra.mxu0 0
  %1056 = vmatprep.subr.bf16.mxu0 0
  %1057 = vmatpush2.bf16.msra.mxu0 0
  %1058 = vmatprep.subr.bf16.mxu0 0
  %1059 = vmatpush2.bf16.msra.mxu0 0
  %1060 = vmatprep.subr.bf16.mxu0 0
  %1061 = vmatpush2.bf16.msra.mxu0 0
  %1062 = vmatprep.subr.bf16.mxu0 0
  %1063 = vmatpush2.bf16.msra.mxu0 0
  %1064 = vmatprep.subr.bf16.mxu0 0
  %1065 = vmatpush2.bf16.msra.mxu0 0
  %1066 = vmatprep.subr.bf16.mxu0 0
  %1067 = vmatpush2.bf16.msra.mxu0 0
  %1068 = vmatprep.mubr.bf16.mxu0 0
  %1069 = vmatmul.mubr.bf16.gmra.mxu0 %v1034
  %v1070 = vpop.f32.mrf.mxu0
  %v1071 = vadd.f32 0.0, %v1070
  %v1072 = vpop.f32.mrf.mxu0
  %v1073 = vpop.f32.mrf.mxu0
  %v1074 = vpop.f32.mrf.mxu0
  %1075 = vdwg.mxu0
  %v1076 = vadd.f32 %v999, %v1071
  %v1077 = vld [vmem:[%s10 + $0x4] sm:$0x2]
  %v1078 = vld [vmem:[%s7 + $0xa0] sm:$0xf]
  %v1079 = vld [vmem:[%s7 + $0xa4] sm:$0xf]
  %v1080 = vld [vmem:[%s7 + $0xa8] sm:$0xf]
  %v1081 = vld [vmem:[%s7 + $0xac] sm:$0xf]
  %v1082 = vld [vmem:[%s7 + $0xb0] sm:$0xf]
  %v1083 = vld [vmem:[%s7 + $0xb4] sm:$0xf]
  %v1084 = vld [vmem:[%s7 + $0xb8] sm:$0xf]
  %v1085 = vld [vmem:[%s7 + $0xbc] sm:$0xf]
  %v1087 = vunpack.c.l.b16 %v1077
  %v1088 = vpack.c.b16 %v1087, %v1087
  %v1089 = vrot.slane %v1088, 1
  %v1098 = vunpack.c.l.b16 %v1078
  %v1099 = vunpack.c.l.b16 %v1079
  %v1100 = vunpack.c.l.b16 %v1080
  %v1101 = vunpack.c.l.b16 %v1081
  %v1102 = vunpack.c.l.b16 %v1082
  %v1103 = vunpack.c.l.b16 %v1083
  %v1104 = vunpack.c.l.b16 %v1084
  %v1105 = vunpack.c.l.b16 %v1085
  %v1106 = vpack.c.b16 %v1099, %v1098
  %v1107 = vpack.c.b16 %v1101, %v1100
  %v1108 = vpack.c.b16 %v1103, %v1102
  %v1109 = vpack.c.b16 %v1105, %v1104
  %v1115 = vsel %vm324, %v1089, 0
  %1117 = vmatprep.subr.bf16.mxu0 0
  %1118 = vmatpush1.bf16.msra.mxu0 0
  %1119 = vmatprep.subr.bf16.mxu0 0
  %1120 = vmatpush1.bf16.msra.mxu0 0
  %1121 = vmatprep.subr.bf16.mxu0 0
  %1122 = vmatpush1.bf16.msra.mxu0 0
  %1123 = vmatprep.subr.bf16.mxu0 0
  %1124 = vmatpush1.bf16.msra.mxu0 0
  %1125 = vmatprep.subr.bf16.mxu0 0
  %1126 = vmatpush1.bf16.msra.mxu0 %v1109
  %1127 = vmatprep.subr.bf16.mxu0 0
  %1128 = vmatpush1.bf16.msra.mxu0 %v1108
  %1129 = vmatprep.subr.bf16.mxu0 0
  %1130 = vmatpush1.bf16.msra.mxu0 %v1107
  %1131 = vmatprep.subr.bf16.mxu0 0
  %1132 = vmatpush1.bf16.msra.mxu0 %v1106
  %1133 = vmatprep.subr.bf16.mxu0 0
  %1134 = vmatpush2.bf16.msra.mxu0 0
  %1135 = vmatprep.subr.bf16.mxu0 0
  %1136 = vmatpush2.bf16.msra.mxu0 0
  %1137 = vmatprep.subr.bf16.mxu0 0
  %1138 = vmatpush2.bf16.msra.mxu0 0
  %1139 = vmatprep.subr.bf16.mxu0 0
  %1140 = vmatpush2.bf16.msra.mxu0 0
  %1141 = vmatprep.subr.bf16.mxu0 0
  %1142 = vmatpush2.bf16.msra.mxu0 0
  %1143 = vmatprep.subr.bf16.mxu0 0
  %1144 = vmatpush2.bf16.msra.mxu0 0
  %1145 = vmatprep.subr.bf16.mxu0 0
  %1146 = vmatpush2.bf16.msra.mxu0 0
  %1147 = vmatprep.subr.bf16.mxu0 0
  %1148 = vmatpush2.bf16.msra.mxu0 0
  %1149 = vmatprep.mubr.bf16.mxu0 0
  %1150 = vmatmul.mubr.bf16.gmra.mxu0 %v1115
  %v1151 = vpop.f32.mrf.mxu0
  %v1152 = vadd.f32 0.0, %v1151
  %v1153 = vpop.f32.mrf.mxu0
  %v1154 = vpop.f32.mrf.mxu0
  %v1155 = vpop.f32.mrf.mxu0
  %1156 = vdwg.mxu0
  %v1157 = vadd.f32 %v1076, %v1152
  %v1158 = vld [vmem:[%s10 + $0x4] sm:$0x4]
  %v1159 = vld [vmem:[%s7 + $0xc0] sm:$0xf]
  %v1160 = vld [vmem:[%s7 + $0xc4] sm:$0xf]
  %v1161 = vld [vmem:[%s7 + $0xc8] sm:$0xf]
  %v1162 = vld [vmem:[%s7 + $0xcc] sm:$0xf]
  %v1163 = vld [vmem:[%s7 + $0xd0] sm:$0xf]
  %v1164 = vld [vmem:[%s7 + $0xd4] sm:$0xf]
  %v1165 = vld [vmem:[%s7 + $0xd8] sm:$0xf]
  %v1166 = vld [vmem:[%s7 + $0xdc] sm:$0xf]
  %v1168 = vunpack.c.l.b16 %v1158
  %v1169 = vpack.c.b16 %v1168, %v1168
  %v1170 = vrot.slane %v1169, 2
  %v1179 = vunpack.c.l.b16 %v1159
  %v1180 = vunpack.c.l.b16 %v1160
  %v1181 = vunpack.c.l.b16 %v1161
  %v1182 = vunpack.c.l.b16 %v1162
  %v1183 = vunpack.c.l.b16 %v1163
  %v1184 = vunpack.c.l.b16 %v1164
  %v1185 = vunpack.c.l.b16 %v1165
  %v1186 = vunpack.c.l.b16 %v1166
  %v1187 = vpack.c.b16 %v1180, %v1179
  %v1188 = vpack.c.b16 %v1182, %v1181
  %v1189 = vpack.c.b16 %v1184, %v1183
  %v1190 = vpack.c.b16 %v1186, %v1185
  %v1196 = vsel %vm324, %v1170, 0
  %1198 = vmatprep.subr.bf16.mxu0 0
  %1199 = vmatpush1.bf16.msra.mxu0 0
  %1200 = vmatprep.subr.bf16.mxu0 0
  %1201 = vmatpush1.bf16.msra.mxu0 0
  %1202 = vmatprep.subr.bf16.mxu0 0
  %1203 = vmatpush1.bf16.msra.mxu0 0
  %1204 = vmatprep.subr.bf16.mxu0 0
  %1205 = vmatpush1.bf16.msra.mxu0 0
  %1206 = vmatprep.subr.bf16.mxu0 0
  %1207 = vmatpush1.bf16.msra.mxu0 %v1190
  %1208 = vmatprep.subr.bf16.mxu0 0
  %1209 = vmatpush1.bf16.msra.mxu0 %v1189
  %1210 = vmatprep.subr.bf16.mxu0 0
  %1211 = vmatpush1.bf16.msra.mxu0 %v1188
  %1212 = vmatprep.subr.bf16.mxu0 0
  %1213 = vmatpush1.bf16.msra.mxu0 %v1187
  %1214 = vmatprep.subr.bf16.mxu0 0
  %1215 = vmatpush2.bf16.msra.mxu0 0
  %1216 = vmatprep.subr.bf16.mxu0 0
  %1217 = vmatpush2.bf16.msra.mxu0 0
  %1218 = vmatprep.subr.bf16.mxu0 0
  %1219 = vmatpush2.bf16.msra.mxu0 0
  %1220 = vmatprep.subr.bf16.mxu0 0
  %1221 = vmatpush2.bf16.msra.mxu0 0
  %1222 = vmatprep.subr.bf16.mxu0 0
  %1223 = vmatpush2.bf16.msra.mxu0 0
  %1224 = vmatprep.subr.bf16.mxu0 0
  %1225 = vmatpush2.bf16.msra.mxu0 0
  %1226 = vmatprep.subr.bf16.mxu0 0
  %1227 = vmatpush2.bf16.msra.mxu0 0
  %1228 = vmatprep.subr.bf16.mxu0 0
  %1229 = vmatpush2.bf16.msra.mxu0 0
  %1230 = vmatprep.mubr.bf16.mxu0 0
  %1231 = vmatmul.mubr.bf16.gmra.mxu0 %v1196
  %v1232 = vpop.f32.mrf.mxu0
  %v1233 = vadd.f32 0.0, %v1232
  %v1234 = vpop.f32.mrf.mxu0
  %v1235 = vpop.f32.mrf.mxu0
  %v1236 = vpop.f32.mrf.mxu0
  %1237 = vdwg.mxu0
  %v1238 = vadd.f32 %v1157, %v1233
  %v1239 = vld [vmem:[%s10 + $0x4] sm:$0x8]
  %v1240 = vld [vmem:[%s7 + $0xe0] sm:$0xf]
  %v1241 = vld [vmem:[%s7 + $0xe4] sm:$0xf]
  %v1242 = vld [vmem:[%s7 + $0xe8] sm:$0xf]
  %v1243 = vld [vmem:[%s7 + $0xec] sm:$0xf]
  %v1244 = vld [vmem:[%s7 + $0xf0] sm:$0xf]
  %v1245 = vld [vmem:[%s7 + $0xf4] sm:$0xf]
  %v1246 = vld [vmem:[%s7 + $0xf8] sm:$0xf]
  %v1247 = vld [vmem:[%s7 + $0xfc] sm:$0xf]
  %v1249 = vunpack.c.l.b16 %v1239
  %v1250 = vpack.c.b16 %v1249, %v1249
  %v1251 = vrot.slane %v1250, 3
  %v1260 = vunpack.c.l.b16 %v1240
  %v1261 = vunpack.c.l.b16 %v1241
  %v1262 = vunpack.c.l.b16 %v1242
  %v1263 = vunpack.c.l.b16 %v1243
  %v1264 = vunpack.c.l.b16 %v1244
  %v1265 = vunpack.c.l.b16 %v1245
  %v1266 = vunpack.c.l.b16 %v1246
  %v1267 = vunpack.c.l.b16 %v1247
  %v1268 = vpack.c.b16 %v1261, %v1260
  %v1269 = vpack.c.b16 %v1263, %v1262
  %v1270 = vpack.c.b16 %v1265, %v1264
  %v1271 = vpack.c.b16 %v1267, %v1266
  %v1277 = vsel %vm324, %v1251, 0
  %1279 = vmatprep.subr.bf16.mxu0 0
  %1280 = vmatpush1.bf16.msra.mxu0 0
  %1281 = vmatprep.subr.bf16.mxu0 0
  %1282 = vmatpush1.bf16.msra.mxu0 0
  %1283 = vmatprep.subr.bf16.mxu0 0
  %1284 = vmatpush1.bf16.msra.mxu0 0
  %1285 = vmatprep.subr.bf16.mxu0 0
  %1286 = vmatpush1.bf16.msra.mxu0 0
  %1287 = vmatprep.subr.bf16.mxu0 0
  %1288 = vmatpush1.bf16.msra.mxu0 %v1271
  %1289 = vmatprep.subr.bf16.mxu0 0
  %1290 = vmatpush1.bf16.msra.mxu0 %v1270
  %1291 = vmatprep.subr.bf16.mxu0 0
  %1292 = vmatpush1.bf16.msra.mxu0 %v1269
  %1293 = vmatprep.subr.bf16.mxu0 0
  %1294 = vmatpush1.bf16.msra.mxu0 %v1268
  %1295 = vmatprep.subr.bf16.mxu0 0
  %1296 = vmatpush2.bf16.msra.mxu0 0
  %1297 = vmatprep.subr.bf16.mxu0 0
  %1298 = vmatpush2.bf16.msra.mxu0 0
  %1299 = vmatprep.subr.bf16.mxu0 0
  %1300 = vmatpush2.bf16.msra.mxu0 0
  %1301 = vmatprep.subr.bf16.mxu0 0
  %1302 = vmatpush2.bf16.msra.mxu0 0
  %1303 = vmatprep.subr.bf16.mxu0 0
  %1304 = vmatpush2.bf16.msra.mxu0 0
  %1305 = vmatprep.subr.bf16.mxu0 0
  %1306 = vmatpush2.bf16.msra.mxu0 0
  %1307 = vmatprep.subr.bf16.mxu0 0
  %1308 = vmatpush2.bf16.msra.mxu0 0
  %1309 = vmatprep.subr.bf16.mxu0 0
  %1310 = vmatpush2.bf16.msra.mxu0 0
  %1311 = vmatprep.mubr.bf16.mxu0 0
  %1312 = vmatmul.mubr.bf16.gmra.mxu0 %v1277
  %v1313 = vpop.f32.mrf.mxu0
  %v1314 = vadd.f32 0.0, %v1313
  %v1315 = vpop.f32.mrf.mxu0
  %v1316 = vpop.f32.mrf.mxu0
  %v1317 = vpop.f32.mrf.mxu0
  %1318 = vdwg.mxu0
  %v1319 = vadd.f32 %v1238, %v1314
  %v1320 = vld [vmem:[%s8] sm:$0x1]
  %v1322 = vlaneseq
  %v1323 = vshrl.u32 %v1322, 7
  %v1324 = vsub.s32 0, %v1323
  %v1325 = vrot.slane %v1320, %v1324
  %v1327 = vadd.f32 %v1319, %v1325
  %v1328 = vmax.f32 %v1327, 0.0
  %v1329 = vand.u32 2147483647, %v1327
  %v1330 = vsub.f32 0.0, %v1329
  %v1331 = vmul.f32 %v1330, 1.442695
  %v1332 = vpow.pop %v1331
  %v1333 = vadd.f32 %v1332, 1.0
  %v1334 = vlog2.pop %v1333
  %v1335 = vmul.f32 %v1334, 0.6931472
  %v1336 = vmul.f32 -0.5, %v1332
  %v1337 = vadd.f32 %v1336, 1.0
  %v1338 = vmul.f32 %v1337, %v1332
  %v1339 = vand.u32 2147483647, %v1332
  %vm1340 = vcmp.lt.f32.partialorder %v1339, 0.0004427343
  %v1341 = vsel %vm1340, %v1338, %v1335
  %v1342 = vadd.f32 %v1328, %v1341
  %v1343 = vadd.f32 %v1342, 1e-08
  %v1344 = vlaneseq
  %v1345 = vand.u32 %v1344, 127
  %vm1346 = vcmp.lt.s32.totalorder %v1345, 6
  %v1347 = vsel %vm1346, %v1327, %v1343
  %vm1348 = vcmask 91136
  %1349 = vst.msk [vmem:[%s11] sm:$0x3] %vm1348, %v1347
  // Predicated region
  $region42: #{encoder_forward.2} parent=0 // pred_check
    _
  $region43: #{encoder_forward.2} parent=0 // pred_check_branch
    %1351 = sbr.rel (0) target = $region45
  $region44: #{encoder_forward.2} parent=0 // pred_region
    _
  $region45: #{encoder_forward.2} parent=0 // pred_fallthru
    _
  // Predicated region
  $region46: #{encoder_forward.2} parent=0 // pred_check
    _
  $region47: #{encoder_forward.2} parent=0 // pred_check_branch
    %1353 = sbr.rel (0) target = $region49
  $region48: #{encoder_forward.2} parent=0 // pred_region
    _
  $region49: #{encoder_forward.2} parent=0 // pred_fallthru
    _
  // Predicated region
  $region50: #{encoder_forward.2} parent=0 // pred_check
    _
  $region51: #{encoder_forward.2} parent=0 // pred_check_branch
    %1355 = sbr.rel (0) target = $region53
  $region52: #{encoder_forward.2} parent=0 // pred_region
    _
  $region53: #{encoder_forward.2} parent=0 // pred_fallthru
    _
  // Predicated region
  $region54: #{encoder_forward.2} parent=0 // pred_check
    _
  $region55: #{encoder_forward.2} parent=0 // pred_check_branch
    %1357 = sbr.rel (0) target = $region57
  $region56: #{encoder_forward.2} parent=0 // pred_region
    _
  $region57: #{encoder_forward.2} parent=0 // pred_fallthru
    _

</llo_original>
